<compile_context>
chip_gen: v6e
topology: v6e:2x2x1
jax: 0.10.0
libtpu: 0.0.40
codegen_flags: <defaults>
</compile_context>

<pallas_src>
import jax
import jax.numpy as jnp
from jax.experimental import pallas as pl
from jax.experimental.pallas import tpu as pltpu


def simple_gru_kernel(emb_ref, len_ref, wih_ref, whh_ref, gbias_ref, bhn_ref,
                      wfc_ref, bfc_ref, out_ref):
    TB = emb_ref.shape[0]
    B = len_ref.shape[0]                         # padded batch (multiple of 8)
    T = TB // B
    H2 = whh_ref.shape[0]                        # 2H
    H = H2 // 2
    H4 = 4 * H

    # --- hoisted input projection: one fused MXU matmul off the serial chain.
    # Row block t holds fwd gates of x_t AND bwd gates of x_{T-1-t}; lane layout
    # is [r_f|r_b|z_f|z_b|n_f|n_b] with b_ih (all gates) and b_hh (r,z) folded in.
    gx_all = jnp.dot(emb_ref[...], wih_ref[...],
                     preferred_element_type=jnp.float32) + gbias_ref[...]

    whh = whh_ref[...]                                     # (2H, 6H) block-diag
    # hoisted broadcasts (JAX does not CSE broadcast_in_dim inside the unroll)
    bhn = jnp.broadcast_to(bhn_ref[...], (B, H2))          # (B, 2H) b_hh_n
    lens_cat = jnp.broadcast_to(len_ref[...], (B, H2))     # (B, 2H) int32
    # fwd half of the carry compares its time index t, bwd half compares T-1-t
    tdir = jnp.concatenate([jnp.zeros((1, H), jnp.int32),
                            jnp.full((1, H), T - 1, jnp.int32)], axis=-1)
    tsign = jnp.concatenate([jnp.ones((1, H), jnp.int32),
                             jnp.full((1, H), -1, jnp.int32)], axis=-1)

    h = jnp.zeros((B, H2), jnp.float32)      # [h_fwd | h_bwd]
    ssum = jnp.zeros((B, H2), jnp.float32)   # running sum for avg-pool
    smax = jnp.zeros((B, H2), jnp.float32)   # zero init == -inf init after relu

    # T is small and static: fully unrolled loop -> static, tile-aligned slices.
    for t in range(T):
        gx = gx_all[t * B:(t + 1) * B, :]                       # (B, 6H)
        gh = jnp.dot(h, whh,
                     preferred_element_type=jnp.float32)        # ONE dot / step
        rz = jax.nn.sigmoid(gx[:, :H4] + gh[:, :H4])            # one 128-lane sigmoid
        r = rz[:, :H2]
        z = rz[:, H2:]
        n = jnp.tanh(gx[:, H4:] + r * (gh[:, H4:] + bhn))       # one 2H-lane tanh
        h_new = (1.0 - z) * n + z * h

        valid = (tdir + t * tsign) < lens_cat                   # (B, 2H) compare
        h = jnp.where(valid, h_new, h)        # packed seq: freeze past length
        o = jnp.where(valid, h_new, 0.0)      # pad_packed: zeros past length
        ssum = ssum + o
        smax = jnp.maximum(smax, o)

    # torch cat order [h_fwd, h_bwd, avg_fwd, avg_bwd, max_fwd, max_bwd]
    # == [h | sum/T | max] with the lane-concat carries.
    feats = jnp.maximum(
        jnp.concatenate([h, ssum * (1.0 / T), smax], axis=-1), 0.0)  # (B, 6H) relu
    out_ref[...] = (jnp.dot(feats, wfc_ref[...],
                            preferred_element_type=jnp.float32) + bfc_ref[...])


def prepare_params(params):
    """One-time (model-load) parameter re-layout; keep out of the per-call path."""
    f32 = lambda x: jnp.asarray(x, jnp.float32)
    H3, E = params["w_ih_f"].shape
    H = H3 // 3
    OUT = params["w_fc"].shape[0]

    wih_f = f32(params["w_ih_f"]).T            # (E, 3H) cols [r|z|n]
    wih_b = f32(params["w_ih_b"]).T
    whh_f = f32(params["w_hh_f"]).T            # (H, 3H)
    whh_b = f32(params["w_hh_b"]).T

    # fused input weight (2E, 6H): rows 0:E act on x_t (fwd), rows E:2E act on
    # x_{T-1-t} (bwd); lane layout [r_f|r_b|z_f|z_b|n_f|n_b]
    zE = jnp.zeros((E, H), jnp.float32)
    wih = jnp.concatenate([
        jnp.concatenate([wih_f[:, 0:H], zE, wih_f[:, H:2 * H], zE,
                         wih_f[:, 2 * H:], zE], axis=1),
        jnp.concatenate([zE, wih_b[:, 0:H], zE, wih_b[:, H:2 * H],
                         zE, wih_b[:, 2 * H:]], axis=1),
    ], axis=0)

    # block-diagonal hidden-hidden weight (2H, 6H), same lane layout
    zH = jnp.zeros((H, H), jnp.float32)
    whh = jnp.concatenate([
        jnp.concatenate([whh_f[:, 0:H], zH, whh_f[:, H:2 * H], zH,
                         whh_f[:, 2 * H:], zH], axis=1),
        jnp.concatenate([zH, whh_b[:, 0:H], zH, whh_b[:, H:2 * H],
                         zH, whh_b[:, 2 * H:]], axis=1),
    ], axis=0)

    bihf, bhhf = f32(params["b_ih_f"]), f32(params["b_hh_f"])
    bihb, bhhb = f32(params["b_ih_b"]), f32(params["b_hh_b"])
    # b_ih (all gates) + b_hh (r,z only); b_hh_n applied inside r*(...)
    gbias = jnp.concatenate([
        bihf[0:H] + bhhf[0:H],          bihb[0:H] + bhhb[0:H],
        bihf[H:2 * H] + bhhf[H:2 * H],  bihb[H:2 * H] + bhhb[H:2 * H],
        bihf[2 * H:],                   bihb[2 * H:],
    ]).reshape(1, 6 * H)
    bhn = jnp.concatenate([bhhf[2 * H:], bhhb[2 * H:]]).reshape(1, 2 * H)

    return dict(emb=f32(params["embedding"]), wih=wih, whh=whh, gbias=gbias,
                bhn=bhn, wfc=f32(params["w_fc"]).T,
                bfc=f32(params["b_fc"]).reshape(1, OUT),
                E=E, H=H, OUT=OUT)


def simple_gru_forward(prepped, input_var, input_len):
    B, T = input_var.shape
    E, OUT = prepped["E"], prepped["OUT"]
    Bp = ((B + 7) // 8) * 8                      # pad batch to a sublane tile

    ids = jnp.asarray(input_var, jnp.int32)
    lens = jnp.asarray(input_len, jnp.int32)
    if Bp != B:
        ids = jnp.pad(ids, ((0, Bp - B), (0, 0)))
        lens = jnp.pad(lens, ((0, Bp - B),))     # len 0 -> rows fully masked off

    # glue (plain JAX): gather straight into time-major [emb(t) | emb(T-1-t)]
    emb_tbe = jnp.take(prepped["emb"], ids.T, axis=0)              # (T, Bp, E)
    emb_cat = jnp.concatenate([emb_tbe, emb_tbe[::-1]], axis=-1)   # (T, Bp, 2E)
    emb2d = emb_cat.reshape(T * Bp, 2 * E)
    lens2d = lens.reshape(Bp, 1)

    vmem = pl.BlockSpec(memory_space=pltpu.MemorySpace.VMEM)
    out = pl.pallas_call(
        simple_gru_kernel,
        out_shape=jax.ShapeDtypeStruct((Bp, OUT), jnp.float32),
        in_specs=[vmem] * 8,
        out_specs=vmem,
    )(emb2d, lens2d, prepped["wih"], prepped["whh"], prepped["gbias"],
      prepped["bhn"], prepped["wfc"], prepped["bfc"])
    return out[:B]


if __name__ == "__main__":
    # Small shapes consistent with the module: vocab=50, embed_dim=32,
    # hidden_size=32, n_layers=1 (bidirectional), output_size=8, batch=2, seq=8.
    V, E, H, OUT = 50, 32, 32, 8
    B, T = 2, 8

    key = jax.random.PRNGKey(0)
    keys = jax.random.split(key, 12)

    def u(k, shape):
        return jax.random.uniform(k, shape, jnp.float32, -0.1, 0.1)

    params = {
        "embedding": u(keys[0], (V, E)),
        "w_ih_f": u(keys[1], (3 * H, E)), "w_hh_f": u(keys[2], (3 * H, H)),
        "b_ih_f": u(keys[3], (3 * H,)),   "b_hh_f": u(keys[4], (3 * H,)),
        "w_ih_b": u(keys[5], (3 * H, E)), "w_hh_b": u(keys[6], (3 * H, H)),
        "b_ih_b": u(keys[7], (3 * H,)),   "b_hh_b": u(keys[8], (3 * H,)),
        "w_fc":   u(keys[9], (OUT, 6 * H)), "b_fc": u(keys[10], (OUT,)),
    }

    input_var = jax.random.randint(keys[11], (B, T), 0, V, dtype=jnp.int32)
    # pack_padded_sequence requires lengths sorted in descending order
    input_len = jnp.array([T, T - 3], dtype=jnp.int32)

    prepped = prepare_params(params)
    out = simple_gru_forward(prepped, input_var, input_len)
    jax.block_until_ready(out)
    assert out.shape == (B, OUT) and bool(jnp.all(jnp.isfinite(out)))
    print("KERNEL_OK")
</pallas_src>

<mosaic_0001>
module attributes {stable_mosaic.version = 11 : i64} {
  func.func @simple_gru_kernel(%arg0: memref<64x64xf32, #tpu.memory_space<vmem>>, %arg1: memref<8x1xi32, #tpu.memory_space<vmem>>, %arg2: memref<64x192xf32, #tpu.memory_space<vmem>>, %arg3: memref<64x192xf32, #tpu.memory_space<vmem>>, %arg4: memref<1x192xf32, #tpu.memory_space<vmem>>, %arg5: memref<1x64xf32, #tpu.memory_space<vmem>>, %arg6: memref<192x8xf32, #tpu.memory_space<vmem>>, %arg7: memref<1x8xf32, #tpu.memory_space<vmem>>, %arg8: memref<8x8xf32, #tpu.memory_space<vmem>>) attributes {dimension_semantics = [], scalar_prefetch = 0 : i64, scratch_operands = 0 : i64, tpu.core_type = #tpu.core_type<tc>} {
    %c0 = arith.constant 0 : index
    %c0_0 = arith.constant 0 : index
    %0 = vector.load %arg0[%c0, %c0_0] : memref<64x64xf32, #tpu.memory_space<vmem>>, vector<64x64xf32>
    %c0_1 = arith.constant 0 : index
    %c0_2 = arith.constant 0 : index
    %1 = vector.load %arg2[%c0_1, %c0_2] : memref<64x192xf32, #tpu.memory_space<vmem>>, vector<64x192xf32>
    %cst = arith.constant dense<0.000000e+00> : vector<64x192xf32>
    %2 = tpu.matmul %0, %1, %cst {dimension_numbers = #tpu.dot_dimension_numbers<[1], [0], [0], [1], [0, 0, 1, 1], [], []>} : vector<64x64xf32>, vector<64x192xf32>, vector<64x192xf32> -> vector<64x192xf32>
    %c0_3 = arith.constant 0 : index
    %c0_4 = arith.constant 0 : index
    %3 = vector.load %arg4[%c0_3, %c0_4] : memref<1x192xf32, #tpu.memory_space<vmem>>, vector<1x192xf32>
    %4 = vector.broadcast %3 : vector<1x192xf32> to vector<64x192xf32>
    %5 = arith.addf %2, %4 : vector<64x192xf32>
    %c0_5 = arith.constant 0 : index
    %c0_6 = arith.constant 0 : index
    %6 = vector.load %arg3[%c0_5, %c0_6] : memref<64x192xf32, #tpu.memory_space<vmem>>, vector<64x192xf32>
    %c0_7 = arith.constant 0 : index
    %c0_8 = arith.constant 0 : index
    %7 = vector.load %arg5[%c0_7, %c0_8] : memref<1x64xf32, #tpu.memory_space<vmem>>, vector<1x64xf32>
    %8 = vector.shape_cast %7 : vector<1x64xf32> to vector<1x64xf32>
    %9 = vector.broadcast %8 : vector<1x64xf32> to vector<8x64xf32>
    %c0_9 = arith.constant 0 : index
    %c0_10 = arith.constant 0 : index
    %10 = vector.load %arg1[%c0_9, %c0_10] : memref<8x1xi32, #tpu.memory_space<vmem>>, vector<8x1xi32>
    %11 = vector.shape_cast %10 : vector<8x1xi32> to vector<8x1xi32>
    %12 = vector.broadcast %11 : vector<8x1xi32> to vector<8x64xi32>
    %c0_i32 = arith.constant 0 : i32
    %13 = vector.broadcast %c0_i32 : i32 to vector<1x32xi32>
    %c7_i32 = arith.constant 7 : i32
    %14 = vector.broadcast %c7_i32 : i32 to vector<1x32xi32>
    %15 = tpu.concatenate %13, %14 in 1 : vector<1x32xi32>, vector<1x32xi32> -> vector<1x64xi32>
    %c1_i32 = arith.constant 1 : i32
    %16 = vector.broadcast %c1_i32 : i32 to vector<1x32xi32>
    %c-1_i32 = arith.constant -1 : i32
    %17 = vector.broadcast %c-1_i32 : i32 to vector<1x32xi32>
    %18 = tpu.concatenate %16, %17 in 1 : vector<1x32xi32>, vector<1x32xi32> -> vector<1x64xi32>
    %cst_11 = arith.constant 0.000000e+00 : f32
    %19 = vector.broadcast %cst_11 : f32 to vector<8x64xf32>
    %cst_12 = arith.constant 0.000000e+00 : f32
    %20 = vector.broadcast %cst_12 : f32 to vector<8x64xf32>
    %cst_13 = arith.constant 0.000000e+00 : f32
    %21 = vector.broadcast %cst_13 : f32 to vector<8x64xf32>
    %22 = vector.extract_strided_slice %5 {offsets = [0, 0], sizes = [8, 192], strides = [1, 1]} : vector<64x192xf32> to vector<8x192xf32>
    %cst_14 = arith.constant dense<0.000000e+00> : vector<8x192xf32>
    %23 = tpu.matmul %19, %6, %cst_14 {dimension_numbers = #tpu.dot_dimension_numbers<[1], [0], [0], [1], [0, 0, 1, 1], [], []>} : vector<8x64xf32>, vector<64x192xf32>, vector<8x192xf32> -> vector<8x192xf32>
    %24 = vector.extract_strided_slice %22 {offsets = [0, 0], sizes = [8, 128], strides = [1, 1]} : vector<8x192xf32> to vector<8x128xf32>
    %25 = vector.extract_strided_slice %23 {offsets = [0, 0], sizes = [8, 128], strides = [1, 1]} : vector<8x192xf32> to vector<8x128xf32>
    %26 = arith.addf %24, %25 : vector<8x128xf32>
    %27 = arith.negf %26 : vector<8x128xf32>
    %28 = math.exp %27 : vector<8x128xf32>
    %cst_15 = arith.constant 1.000000e+00 : f32
    %29 = vector.broadcast %cst_15 : f32 to vector<8x128xf32>
    %30 = arith.addf %29, %28 : vector<8x128xf32>
    %31 = arith.divf %29, %30 : vector<8x128xf32>
    %32 = vector.extract_strided_slice %31 {offsets = [0, 0], sizes = [8, 64], strides = [1, 1]} : vector<8x128xf32> to vector<8x64xf32>
    %33 = vector.extract_strided_slice %31 {offsets = [0, 64], sizes = [8, 64], strides = [1, 1]} : vector<8x128xf32> to vector<8x64xf32>
    %34 = vector.extract_strided_slice %22 {offsets = [0, 128], sizes = [8, 64], strides = [1, 1]} : vector<8x192xf32> to vector<8x64xf32>
    %35 = vector.extract_strided_slice %23 {offsets = [0, 128], sizes = [8, 64], strides = [1, 1]} : vector<8x192xf32> to vector<8x64xf32>
    %36 = arith.addf %35, %9 : vector<8x64xf32>
    %37 = arith.mulf %32, %36 : vector<8x64xf32>
    %38 = arith.addf %34, %37 : vector<8x64xf32>
    %39 = math.tanh %38 : vector<8x64xf32>
    %cst_16 = arith.constant 1.000000e+00 : f32
    %40 = vector.broadcast %cst_16 : f32 to vector<8x64xf32>
    %41 = arith.subf %40, %33 : vector<8x64xf32>
    %42 = arith.mulf %41, %39 : vector<8x64xf32>
    %43 = arith.mulf %33, %19 : vector<8x64xf32>
    %44 = arith.addf %42, %43 : vector<8x64xf32>
    %c0_i32_17 = arith.constant 0 : i32
    %45 = vector.broadcast %c0_i32_17 : i32 to vector<1x64xi32>
    %46 = arith.muli %45, %18 : vector<1x64xi32>
    %47 = arith.addi %15, %46 : vector<1x64xi32>
    %48 = vector.broadcast %47 : vector<1x64xi32> to vector<8x64xi32>
    %49 = arith.cmpi slt, %48, %12 : vector<8x64xi32>
    %50 = arith.select %49, %44, %19 : vector<8x64xi1>, vector<8x64xf32>
    %cst_18 = arith.constant 0.000000e+00 : f32
    %51 = vector.broadcast %cst_18 : f32 to vector<8x64xf32>
    %52 = arith.select %49, %44, %51 : vector<8x64xi1>, vector<8x64xf32>
    %53 = arith.addf %20, %52 : vector<8x64xf32>
    %54 = arith.maximumf %21, %52 : vector<8x64xf32>
    %55 = vector.extract_strided_slice %5 {offsets = [8, 0], sizes = [8, 192], strides = [1, 1]} : vector<64x192xf32> to vector<8x192xf32>
    %cst_19 = arith.constant dense<0.000000e+00> : vector<8x192xf32>
    %56 = tpu.matmul %50, %6, %cst_19 {dimension_numbers = #tpu.dot_dimension_numbers<[1], [0], [0], [1], [0, 0, 1, 1], [], []>} : vector<8x64xf32>, vector<64x192xf32>, vector<8x192xf32> -> vector<8x192xf32>
    %57 = vector.extract_strided_slice %55 {offsets = [0, 0], sizes = [8, 128], strides = [1, 1]} : vector<8x192xf32> to vector<8x128xf32>
    %58 = vector.extract_strided_slice %56 {offsets = [0, 0], sizes = [8, 128], strides = [1, 1]} : vector<8x192xf32> to vector<8x128xf32>
    %59 = arith.addf %57, %58 : vector<8x128xf32>
    %60 = arith.negf %59 : vector<8x128xf32>
    %61 = math.exp %60 : vector<8x128xf32>
    %cst_20 = arith.constant 1.000000e+00 : f32
    %62 = vector.broadcast %cst_20 : f32 to vector<8x128xf32>
    %63 = arith.addf %62, %61 : vector<8x128xf32>
    %64 = arith.divf %62, %63 : vector<8x128xf32>
    %65 = vector.extract_strided_slice %64 {offsets = [0, 0], sizes = [8, 64], strides = [1, 1]} : vector<8x128xf32> to vector<8x64xf32>
    %66 = vector.extract_strided_slice %64 {offsets = [0, 64], sizes = [8, 64], strides = [1, 1]} : vector<8x128xf32> to vector<8x64xf32>
    %67 = vector.extract_strided_slice %55 {offsets = [0, 128], sizes = [8, 64], strides = [1, 1]} : vector<8x192xf32> to vector<8x64xf32>
    %68 = vector.extract_strided_slice %56 {offsets = [0, 128], sizes = [8, 64], strides = [1, 1]} : vector<8x192xf32> to vector<8x64xf32>
    %69 = arith.addf %68, %9 : vector<8x64xf32>
    %70 = arith.mulf %65, %69 : vector<8x64xf32>
    %71 = arith.addf %67, %70 : vector<8x64xf32>
    %72 = math.tanh %71 : vector<8x64xf32>
    %cst_21 = arith.constant 1.000000e+00 : f32
    %73 = vector.broadcast %cst_21 : f32 to vector<8x64xf32>
    %74 = arith.subf %73, %66 : vector<8x64xf32>
    %75 = arith.mulf %74, %72 : vector<8x64xf32>
    %76 = arith.mulf %66, %50 : vector<8x64xf32>
    %77 = arith.addf %75, %76 : vector<8x64xf32>
    %c1_i32_22 = arith.constant 1 : i32
    %78 = vector.broadcast %c1_i32_22 : i32 to vector<1x64xi32>
    %79 = arith.muli %78, %18 : vector<1x64xi32>
    %80 = arith.addi %15, %79 : vector<1x64xi32>
    %81 = vector.broadcast %80 : vector<1x64xi32> to vector<8x64xi32>
    %82 = arith.cmpi slt, %81, %12 : vector<8x64xi32>
    %83 = arith.select %82, %77, %50 : vector<8x64xi1>, vector<8x64xf32>
    %cst_23 = arith.constant 0.000000e+00 : f32
    %84 = vector.broadcast %cst_23 : f32 to vector<8x64xf32>
    %85 = arith.select %82, %77, %84 : vector<8x64xi1>, vector<8x64xf32>
    %86 = arith.addf %53, %85 : vector<8x64xf32>
    %87 = arith.maximumf %54, %85 : vector<8x64xf32>
    %88 = vector.extract_strided_slice %5 {offsets = [16, 0], sizes = [8, 192], strides = [1, 1]} : vector<64x192xf32> to vector<8x192xf32>
    %cst_24 = arith.constant dense<0.000000e+00> : vector<8x192xf32>
    %89 = tpu.matmul %83, %6, %cst_24 {dimension_numbers = #tpu.dot_dimension_numbers<[1], [0], [0], [1], [0, 0, 1, 1], [], []>} : vector<8x64xf32>, vector<64x192xf32>, vector<8x192xf32> -> vector<8x192xf32>
    %90 = vector.extract_strided_slice %88 {offsets = [0, 0], sizes = [8, 128], strides = [1, 1]} : vector<8x192xf32> to vector<8x128xf32>
    %91 = vector.extract_strided_slice %89 {offsets = [0, 0], sizes = [8, 128], strides = [1, 1]} : vector<8x192xf32> to vector<8x128xf32>
    %92 = arith.addf %90, %91 : vector<8x128xf32>
    %93 = arith.negf %92 : vector<8x128xf32>
    %94 = math.exp %93 : vector<8x128xf32>
    %cst_25 = arith.constant 1.000000e+00 : f32
    %95 = vector.broadcast %cst_25 : f32 to vector<8x128xf32>
    %96 = arith.addf %95, %94 : vector<8x128xf32>
    %97 = arith.divf %95, %96 : vector<8x128xf32>
    %98 = vector.extract_strided_slice %97 {offsets = [0, 0], sizes = [8, 64], strides = [1, 1]} : vector<8x128xf32> to vector<8x64xf32>
    %99 = vector.extract_strided_slice %97 {offsets = [0, 64], sizes = [8, 64], strides = [1, 1]} : vector<8x128xf32> to vector<8x64xf32>
    %100 = vector.extract_strided_slice %88 {offsets = [0, 128], sizes = [8, 64], strides = [1, 1]} : vector<8x192xf32> to vector<8x64xf32>
    %101 = vector.extract_strided_slice %89 {offsets = [0, 128], sizes = [8, 64], strides = [1, 1]} : vector<8x192xf32> to vector<8x64xf32>
    %102 = arith.addf %101, %9 : vector<8x64xf32>
    %103 = arith.mulf %98, %102 : vector<8x64xf32>
    %104 = arith.addf %100, %103 : vector<8x64xf32>
    %105 = math.tanh %104 : vector<8x64xf32>
    %cst_26 = arith.constant 1.000000e+00 : f32
    %106 = vector.broadcast %cst_26 : f32 to vector<8x64xf32>
    %107 = arith.subf %106, %99 : vector<8x64xf32>
    %108 = arith.mulf %107, %105 : vector<8x64xf32>
    %109 = arith.mulf %99, %83 : vector<8x64xf32>
    %110 = arith.addf %108, %109 : vector<8x64xf32>
    %c2_i32 = arith.constant 2 : i32
    %111 = vector.broadcast %c2_i32 : i32 to vector<1x64xi32>
    %112 = arith.muli %111, %18 : vector<1x64xi32>
    %113 = arith.addi %15, %112 : vector<1x64xi32>
    %114 = vector.broadcast %113 : vector<1x64xi32> to vector<8x64xi32>
    %115 = arith.cmpi slt, %114, %12 : vector<8x64xi32>
    %116 = arith.select %115, %110, %83 : vector<8x64xi1>, vector<8x64xf32>
    %cst_27 = arith.constant 0.000000e+00 : f32
    %117 = vector.broadcast %cst_27 : f32 to vector<8x64xf32>
    %118 = arith.select %115, %110, %117 : vector<8x64xi1>, vector<8x64xf32>
    %119 = arith.addf %86, %118 : vector<8x64xf32>
    %120 = arith.maximumf %87, %118 : vector<8x64xf32>
    %121 = vector.extract_strided_slice %5 {offsets = [24, 0], sizes = [8, 192], strides = [1, 1]} : vector<64x192xf32> to vector<8x192xf32>
    %cst_28 = arith.constant dense<0.000000e+00> : vector<8x192xf32>
    %122 = tpu.matmul %116, %6, %cst_28 {dimension_numbers = #tpu.dot_dimension_numbers<[1], [0], [0], [1], [0, 0, 1, 1], [], []>} : vector<8x64xf32>, vector<64x192xf32>, vector<8x192xf32> -> vector<8x192xf32>
    %123 = vector.extract_strided_slice %121 {offsets = [0, 0], sizes = [8, 128], strides = [1, 1]} : vector<8x192xf32> to vector<8x128xf32>
    %124 = vector.extract_strided_slice %122 {offsets = [0, 0], sizes = [8, 128], strides = [1, 1]} : vector<8x192xf32> to vector<8x128xf32>
    %125 = arith.addf %123, %124 : vector<8x128xf32>
    %126 = arith.negf %125 : vector<8x128xf32>
    %127 = math.exp %126 : vector<8x128xf32>
    %cst_29 = arith.constant 1.000000e+00 : f32
    %128 = vector.broadcast %cst_29 : f32 to vector<8x128xf32>
    %129 = arith.addf %128, %127 : vector<8x128xf32>
    %130 = arith.divf %128, %129 : vector<8x128xf32>
    %131 = vector.extract_strided_slice %130 {offsets = [0, 0], sizes = [8, 64], strides = [1, 1]} : vector<8x128xf32> to vector<8x64xf32>
    %132 = vector.extract_strided_slice %130 {offsets = [0, 64], sizes = [8, 64], strides = [1, 1]} : vector<8x128xf32> to vector<8x64xf32>
    %133 = vector.extract_strided_slice %121 {offsets = [0, 128], sizes = [8, 64], strides = [1, 1]} : vector<8x192xf32> to vector<8x64xf32>
    %134 = vector.extract_strided_slice %122 {offsets = [0, 128], sizes = [8, 64], strides = [1, 1]} : vector<8x192xf32> to vector<8x64xf32>
    %135 = arith.addf %134, %9 : vector<8x64xf32>
    %136 = arith.mulf %131, %135 : vector<8x64xf32>
    %137 = arith.addf %133, %136 : vector<8x64xf32>
    %138 = math.tanh %137 : vector<8x64xf32>
    %cst_30 = arith.constant 1.000000e+00 : f32
    %139 = vector.broadcast %cst_30 : f32 to vector<8x64xf32>
    %140 = arith.subf %139, %132 : vector<8x64xf32>
    %141 = arith.mulf %140, %138 : vector<8x64xf32>
    %142 = arith.mulf %132, %116 : vector<8x64xf32>
    %143 = arith.addf %141, %142 : vector<8x64xf32>
    %c3_i32 = arith.constant 3 : i32
    %144 = vector.broadcast %c3_i32 : i32 to vector<1x64xi32>
    %145 = arith.muli %144, %18 : vector<1x64xi32>
    %146 = arith.addi %15, %145 : vector<1x64xi32>
    %147 = vector.broadcast %146 : vector<1x64xi32> to vector<8x64xi32>
    %148 = arith.cmpi slt, %147, %12 : vector<8x64xi32>
    %149 = arith.select %148, %143, %116 : vector<8x64xi1>, vector<8x64xf32>
    %cst_31 = arith.constant 0.000000e+00 : f32
    %150 = vector.broadcast %cst_31 : f32 to vector<8x64xf32>
    %151 = arith.select %148, %143, %150 : vector<8x64xi1>, vector<8x64xf32>
    %152 = arith.addf %119, %151 : vector<8x64xf32>
    %153 = arith.maximumf %120, %151 : vector<8x64xf32>
    %154 = vector.extract_strided_slice %5 {offsets = [32, 0], sizes = [8, 192], strides = [1, 1]} : vector<64x192xf32> to vector<8x192xf32>
    %cst_32 = arith.constant dense<0.000000e+00> : vector<8x192xf32>
    %155 = tpu.matmul %149, %6, %cst_32 {dimension_numbers = #tpu.dot_dimension_numbers<[1], [0], [0], [1], [0, 0, 1, 1], [], []>} : vector<8x64xf32>, vector<64x192xf32>, vector<8x192xf32> -> vector<8x192xf32>
    %156 = vector.extract_strided_slice %154 {offsets = [0, 0], sizes = [8, 128], strides = [1, 1]} : vector<8x192xf32> to vector<8x128xf32>
    %157 = vector.extract_strided_slice %155 {offsets = [0, 0], sizes = [8, 128], strides = [1, 1]} : vector<8x192xf32> to vector<8x128xf32>
    %158 = arith.addf %156, %157 : vector<8x128xf32>
    %159 = arith.negf %158 : vector<8x128xf32>
    %160 = math.exp %159 : vector<8x128xf32>
    %cst_33 = arith.constant 1.000000e+00 : f32
    %161 = vector.broadcast %cst_33 : f32 to vector<8x128xf32>
    %162 = arith.addf %161, %160 : vector<8x128xf32>
    %163 = arith.divf %161, %162 : vector<8x128xf32>
    %164 = vector.extract_strided_slice %163 {offsets = [0, 0], sizes = [8, 64], strides = [1, 1]} : vector<8x128xf32> to vector<8x64xf32>
    %165 = vector.extract_strided_slice %163 {offsets = [0, 64], sizes = [8, 64], strides = [1, 1]} : vector<8x128xf32> to vector<8x64xf32>
    %166 = vector.extract_strided_slice %154 {offsets = [0, 128], sizes = [8, 64], strides = [1, 1]} : vector<8x192xf32> to vector<8x64xf32>
    %167 = vector.extract_strided_slice %155 {offsets = [0, 128], sizes = [8, 64], strides = [1, 1]} : vector<8x192xf32> to vector<8x64xf32>
    %168 = arith.addf %167, %9 : vector<8x64xf32>
    %169 = arith.mulf %164, %168 : vector<8x64xf32>
    %170 = arith.addf %166, %169 : vector<8x64xf32>
    %171 = math.tanh %170 : vector<8x64xf32>
    %cst_34 = arith.constant 1.000000e+00 : f32
    %172 = vector.broadcast %cst_34 : f32 to vector<8x64xf32>
    %173 = arith.subf %172, %165 : vector<8x64xf32>
    %174 = arith.mulf %173, %171 : vector<8x64xf32>
    %175 = arith.mulf %165, %149 : vector<8x64xf32>
    %176 = arith.addf %174, %175 : vector<8x64xf32>
    %c4_i32 = arith.constant 4 : i32
    %177 = vector.broadcast %c4_i32 : i32 to vector<1x64xi32>
    %178 = arith.muli %177, %18 : vector<1x64xi32>
    %179 = arith.addi %15, %178 : vector<1x64xi32>
    %180 = vector.broadcast %179 : vector<1x64xi32> to vector<8x64xi32>
    %181 = arith.cmpi slt, %180, %12 : vector<8x64xi32>
    %182 = arith.select %181, %176, %149 : vector<8x64xi1>, vector<8x64xf32>
    %cst_35 = arith.constant 0.000000e+00 : f32
    %183 = vector.broadcast %cst_35 : f32 to vector<8x64xf32>
    %184 = arith.select %181, %176, %183 : vector<8x64xi1>, vector<8x64xf32>
    %185 = arith.addf %152, %184 : vector<8x64xf32>
    %186 = arith.maximumf %153, %184 : vector<8x64xf32>
    %187 = vector.extract_strided_slice %5 {offsets = [40, 0], sizes = [8, 192], strides = [1, 1]} : vector<64x192xf32> to vector<8x192xf32>
    %cst_36 = arith.constant dense<0.000000e+00> : vector<8x192xf32>
    %188 = tpu.matmul %182, %6, %cst_36 {dimension_numbers = #tpu.dot_dimension_numbers<[1], [0], [0], [1], [0, 0, 1, 1], [], []>} : vector<8x64xf32>, vector<64x192xf32>, vector<8x192xf32> -> vector<8x192xf32>
    %189 = vector.extract_strided_slice %187 {offsets = [0, 0], sizes = [8, 128], strides = [1, 1]} : vector<8x192xf32> to vector<8x128xf32>
    %190 = vector.extract_strided_slice %188 {offsets = [0, 0], sizes = [8, 128], strides = [1, 1]} : vector<8x192xf32> to vector<8x128xf32>
    %191 = arith.addf %189, %190 : vector<8x128xf32>
    %192 = arith.negf %191 : vector<8x128xf32>
    %193 = math.exp %192 : vector<8x128xf32>
    %cst_37 = arith.constant 1.000000e+00 : f32
    %194 = vector.broadcast %cst_37 : f32 to vector<8x128xf32>
    %195 = arith.addf %194, %193 : vector<8x128xf32>
    %196 = arith.divf %194, %195 : vector<8x128xf32>
    %197 = vector.extract_strided_slice %196 {offsets = [0, 0], sizes = [8, 64], strides = [1, 1]} : vector<8x128xf32> to vector<8x64xf32>
    %198 = vector.extract_strided_slice %196 {offsets = [0, 64], sizes = [8, 64], strides = [1, 1]} : vector<8x128xf32> to vector<8x64xf32>
    %199 = vector.extract_strided_slice %187 {offsets = [0, 128], sizes = [8, 64], strides = [1, 1]} : vector<8x192xf32> to vector<8x64xf32>
    %200 = vector.extract_strided_slice %188 {offsets = [0, 128], sizes = [8, 64], strides = [1, 1]} : vector<8x192xf32> to vector<8x64xf32>
    %201 = arith.addf %200, %9 : vector<8x64xf32>
    %202 = arith.mulf %197, %201 : vector<8x64xf32>
    %203 = arith.addf %199, %202 : vector<8x64xf32>
    %204 = math.tanh %203 : vector<8x64xf32>
    %cst_38 = arith.constant 1.000000e+00 : f32
    %205 = vector.broadcast %cst_38 : f32 to vector<8x64xf32>
    %206 = arith.subf %205, %198 : vector<8x64xf32>
    %207 = arith.mulf %206, %204 : vector<8x64xf32>
    %208 = arith.mulf %198, %182 : vector<8x64xf32>
    %209 = arith.addf %207, %208 : vector<8x64xf32>
    %c5_i32 = arith.constant 5 : i32
    %210 = vector.broadcast %c5_i32 : i32 to vector<1x64xi32>
    %211 = arith.muli %210, %18 : vector<1x64xi32>
    %212 = arith.addi %15, %211 : vector<1x64xi32>
    %213 = vector.broadcast %212 : vector<1x64xi32> to vector<8x64xi32>
    %214 = arith.cmpi slt, %213, %12 : vector<8x64xi32>
    %215 = arith.select %214, %209, %182 : vector<8x64xi1>, vector<8x64xf32>
    %cst_39 = arith.constant 0.000000e+00 : f32
    %216 = vector.broadcast %cst_39 : f32 to vector<8x64xf32>
    %217 = arith.select %214, %209, %216 : vector<8x64xi1>, vector<8x64xf32>
    %218 = arith.addf %185, %217 : vector<8x64xf32>
    %219 = arith.maximumf %186, %217 : vector<8x64xf32>
    %220 = vector.extract_strided_slice %5 {offsets = [48, 0], sizes = [8, 192], strides = [1, 1]} : vector<64x192xf32> to vector<8x192xf32>
    %cst_40 = arith.constant dense<0.000000e+00> : vector<8x192xf32>
    %221 = tpu.matmul %215, %6, %cst_40 {dimension_numbers = #tpu.dot_dimension_numbers<[1], [0], [0], [1], [0, 0, 1, 1], [], []>} : vector<8x64xf32>, vector<64x192xf32>, vector<8x192xf32> -> vector<8x192xf32>
    %222 = vector.extract_strided_slice %220 {offsets = [0, 0], sizes = [8, 128], strides = [1, 1]} : vector<8x192xf32> to vector<8x128xf32>
    %223 = vector.extract_strided_slice %221 {offsets = [0, 0], sizes = [8, 128], strides = [1, 1]} : vector<8x192xf32> to vector<8x128xf32>
    %224 = arith.addf %222, %223 : vector<8x128xf32>
    %225 = arith.negf %224 : vector<8x128xf32>
    %226 = math.exp %225 : vector<8x128xf32>
    %cst_41 = arith.constant 1.000000e+00 : f32
    %227 = vector.broadcast %cst_41 : f32 to vector<8x128xf32>
    %228 = arith.addf %227, %226 : vector<8x128xf32>
    %229 = arith.divf %227, %228 : vector<8x128xf32>
    %230 = vector.extract_strided_slice %229 {offsets = [0, 0], sizes = [8, 64], strides = [1, 1]} : vector<8x128xf32> to vector<8x64xf32>
    %231 = vector.extract_strided_slice %229 {offsets = [0, 64], sizes = [8, 64], strides = [1, 1]} : vector<8x128xf32> to vector<8x64xf32>
    %232 = vector.extract_strided_slice %220 {offsets = [0, 128], sizes = [8, 64], strides = [1, 1]} : vector<8x192xf32> to vector<8x64xf32>
    %233 = vector.extract_strided_slice %221 {offsets = [0, 128], sizes = [8, 64], strides = [1, 1]} : vector<8x192xf32> to vector<8x64xf32>
    %234 = arith.addf %233, %9 : vector<8x64xf32>
    %235 = arith.mulf %230, %234 : vector<8x64xf32>
    %236 = arith.addf %232, %235 : vector<8x64xf32>
    %237 = math.tanh %236 : vector<8x64xf32>
    %cst_42 = arith.constant 1.000000e+00 : f32
    %238 = vector.broadcast %cst_42 : f32 to vector<8x64xf32>
    %239 = arith.subf %238, %231 : vector<8x64xf32>
    %240 = arith.mulf %239, %237 : vector<8x64xf32>
    %241 = arith.mulf %231, %215 : vector<8x64xf32>
    %242 = arith.addf %240, %241 : vector<8x64xf32>
    %c6_i32 = arith.constant 6 : i32
    %243 = vector.broadcast %c6_i32 : i32 to vector<1x64xi32>
    %244 = arith.muli %243, %18 : vector<1x64xi32>
    %245 = arith.addi %15, %244 : vector<1x64xi32>
    %246 = vector.broadcast %245 : vector<1x64xi32> to vector<8x64xi32>
    %247 = arith.cmpi slt, %246, %12 : vector<8x64xi32>
    %248 = arith.select %247, %242, %215 : vector<8x64xi1>, vector<8x64xf32>
    %cst_43 = arith.constant 0.000000e+00 : f32
    %249 = vector.broadcast %cst_43 : f32 to vector<8x64xf32>
    %250 = arith.select %247, %242, %249 : vector<8x64xi1>, vector<8x64xf32>
    %251 = arith.addf %218, %250 : vector<8x64xf32>
    %252 = arith.maximumf %219, %250 : vector<8x64xf32>
    %253 = vector.extract_strided_slice %5 {offsets = [56, 0], sizes = [8, 192], strides = [1, 1]} : vector<64x192xf32> to vector<8x192xf32>
    %cst_44 = arith.constant dense<0.000000e+00> : vector<8x192xf32>
    %254 = tpu.matmul %248, %6, %cst_44 {dimension_numbers = #tpu.dot_dimension_numbers<[1], [0], [0], [1], [0, 0, 1, 1], [], []>} : vector<8x64xf32>, vector<64x192xf32>, vector<8x192xf32> -> vector<8x192xf32>
    %255 = vector.extract_strided_slice %253 {offsets = [0, 0], sizes = [8, 128], strides = [1, 1]} : vector<8x192xf32> to vector<8x128xf32>
    %256 = vector.extract_strided_slice %254 {offsets = [0, 0], sizes = [8, 128], strides = [1, 1]} : vector<8x192xf32> to vector<8x128xf32>
    %257 = arith.addf %255, %256 : vector<8x128xf32>
    %258 = arith.negf %257 : vector<8x128xf32>
    %259 = math.exp %258 : vector<8x128xf32>
    %cst_45 = arith.constant 1.000000e+00 : f32
    %260 = vector.broadcast %cst_45 : f32 to vector<8x128xf32>
    %261 = arith.addf %260, %259 : vector<8x128xf32>
    %262 = arith.divf %260, %261 : vector<8x128xf32>
    %263 = vector.extract_strided_slice %262 {offsets = [0, 0], sizes = [8, 64], strides = [1, 1]} : vector<8x128xf32> to vector<8x64xf32>
    %264 = vector.extract_strided_slice %262 {offsets = [0, 64], sizes = [8, 64], strides = [1, 1]} : vector<8x128xf32> to vector<8x64xf32>
    %265 = vector.extract_strided_slice %253 {offsets = [0, 128], sizes = [8, 64], strides = [1, 1]} : vector<8x192xf32> to vector<8x64xf32>
    %266 = vector.extract_strided_slice %254 {offsets = [0, 128], sizes = [8, 64], strides = [1, 1]} : vector<8x192xf32> to vector<8x64xf32>
    %267 = arith.addf %266, %9 : vector<8x64xf32>
    %268 = arith.mulf %263, %267 : vector<8x64xf32>
    %269 = arith.addf %265, %268 : vector<8x64xf32>
    %270 = math.tanh %269 : vector<8x64xf32>
    %cst_46 = arith.constant 1.000000e+00 : f32
    %271 = vector.broadcast %cst_46 : f32 to vector<8x64xf32>
    %272 = arith.subf %271, %264 : vector<8x64xf32>
    %273 = arith.mulf %272, %270 : vector<8x64xf32>
    %274 = arith.mulf %264, %248 : vector<8x64xf32>
    %275 = arith.addf %273, %274 : vector<8x64xf32>
    %c7_i32_47 = arith.constant 7 : i32
    %276 = vector.broadcast %c7_i32_47 : i32 to vector<1x64xi32>
    %277 = arith.muli %276, %18 : vector<1x64xi32>
    %278 = arith.addi %15, %277 : vector<1x64xi32>
    %279 = vector.broadcast %278 : vector<1x64xi32> to vector<8x64xi32>
    %280 = arith.cmpi slt, %279, %12 : vector<8x64xi32>
    %281 = arith.select %280, %275, %248 : vector<8x64xi1>, vector<8x64xf32>
    %cst_48 = arith.constant 0.000000e+00 : f32
    %282 = vector.broadcast %cst_48 : f32 to vector<8x64xf32>
    %283 = arith.select %280, %275, %282 : vector<8x64xi1>, vector<8x64xf32>
    %284 = arith.addf %251, %283 : vector<8x64xf32>
    %285 = arith.maximumf %252, %283 : vector<8x64xf32>
    %cst_49 = arith.constant 1.250000e-01 : f32
    %286 = vector.broadcast %cst_49 : f32 to vector<8x64xf32>
    %287 = arith.mulf %284, %286 : vector<8x64xf32>
    %288 = tpu.concatenate %281, %287, %285 in 1 : vector<8x64xf32>, vector<8x64xf32>, vector<8x64xf32> -> vector<8x192xf32>
    %cst_50 = arith.constant 0.000000e+00 : f32
    %289 = vector.broadcast %cst_50 : f32 to vector<8x192xf32>
    %290 = arith.maximumf %288, %289 : vector<8x192xf32>
    %c0_51 = arith.constant 0 : index
    %c0_52 = arith.constant 0 : index
    %291 = vector.load %arg6[%c0_51, %c0_52] : memref<192x8xf32, #tpu.memory_space<vmem>>, vector<192x8xf32>
    %cst_53 = arith.constant dense<0.000000e+00> : vector<8x8xf32>
    %292 = tpu.matmul %290, %291, %cst_53 {dimension_numbers = #tpu.dot_dimension_numbers<[1], [0], [0], [1], [0, 0, 1, 1], [], []>} : vector<8x192xf32>, vector<192x8xf32>, vector<8x8xf32> -> vector<8x8xf32>
    %c0_54 = arith.constant 0 : index
    %c0_55 = arith.constant 0 : index
    %293 = vector.load %arg7[%c0_54, %c0_55] : memref<1x8xf32, #tpu.memory_space<vmem>>, vector<1x8xf32>
    %294 = vector.broadcast %293 : vector<1x8xf32> to vector<8x8xf32>
    %295 = arith.addf %292, %294 : vector<8x8xf32>
    %c0_56 = arith.constant 0 : index
    %c0_57 = arith.constant 0 : index
    %296 = vector.load %arg8[%c0_56, %c0_57] : memref<8x8xf32, #tpu.memory_space<vmem>>, vector<8x8xf32>
    tpu.vector_store %arg8[%c0_56, %c0_57], %295 {strides = array<i32>} : memref<8x8xf32, #tpu.memory_space<vmem>>, vector<8x8xf32>,
    return
  }
}

</mosaic_0001>

<llo_original>
// kernel: tpu_custom_call.1
$region0: #{tpu_custom_call.1}
  #allocation0 [shape = 'u32[]', space=smem, size = 0x4, offset = 0x4, fixed_abs, tag = 'smem constant byte address 0x4 - core index']
  #allocation1 [shape = 'u32[144,128]{1,0:T(1,128)}', space=vmem, size = 0x12000, scoped, tag = 'internal scratch']
  %s0 = inlined_call_operand.vmem [shape: f32[64,64], index: 0, kind: input, shape index: {}]
  %s1 = inlined_call_operand.vmem [shape: s32[8,1], index: 1, kind: input, shape index: {}]
  %s2 = inlined_call_operand.vmem [shape: f32[64,192], index: 2, kind: input, shape index: {}]
  %s3 = inlined_call_operand.hbm [shape: f32[64,192], index: 3, kind: input, shape index: {}]
  %s4 = inlined_call_operand.vmem [shape: f32[1,192], index: 4, kind: input, shape index: {}]
  %s5 = inlined_call_operand.vmem [shape: f32[1,64], index: 5, kind: input, shape index: {}]
  %s6 = inlined_call_operand.vmem [shape: f32[192,8], index: 6, kind: input, shape index: {}]
  %s7 = inlined_call_operand.vmem [shape: f32[1,8], index: 7, kind: input, shape index: {}]
  %s8 = inlined_call_operand.hbm [shape: f32[8,8], index: 8, kind: output, shape index: {}]
  %s9 = sld [smem:[#allocation0]]
  $region46: #{tpu_custom_call.1} parent=0
    _
  %s11 = ssub.s32 1, %s9
  %s12 = scalar_select 0, %s11, %s9
  $region1: #{tpu_custom_call.1} parent=0
    #allocation2 [shape = 'u8[65536]{0}', space=vmem, size = 0x10000, scoped, tag = 'input window, operand 3, single buffered']
    #allocation3 [shape = 's32[1]{0}', space=sflag, size = 0x4, scoped, tag = 'scoped memory for tpu_custom_call.1']
    #allocation4 [shape = 's32[1]{0}', space=sflag, size = 0x4, scoped, tag = 'scoped memory for tpu_custom_call.1']
    #allocation5 [shape = 'u8[4096]{0}', space=vmem, size = 0x1000, scoped, tag = 'output window, operand 0, single buffered']
    %13 = vsyncpa [#allocation3], 0
    %14 = vsyncpa [#allocation4], 0
    // Predicated region
    $region2: #{tpu_custom_call.1} parent=1 // pred_check
      _
    $region3: #{tpu_custom_call.1} parent=1 // pred_check_branch
      %16 = sbr.rel (0) target = $region5
    $region4: #{tpu_custom_call.1} parent=1 // pred_region
      _
    $region5: #{tpu_custom_call.1} parent=1 // pred_fallthru
      _
    // Predicated region
    $region6: #{tpu_custom_call.1} parent=1 // pred_check
      _
    $region7: #{tpu_custom_call.1} parent=1 // pred_check_branch
      %18 = sbr.rel (0) target = $region9
    $region8: #{tpu_custom_call.1} parent=1 // pred_region
      _
    $region9: #{tpu_custom_call.1} parent=1 // pred_fallthru
      _
    // Predicated region
    $region10: #{tpu_custom_call.1} parent=1 // pred_check
      _
    $region11: #{tpu_custom_call.1} parent=1 // pred_check_branch
      %20 = sbr.rel (0) target = $region13
    $region12: #{tpu_custom_call.1} parent=1 // pred_region
      _
    $region13: #{tpu_custom_call.1} parent=1 // pred_fallthru
      _
    // Predicated region
    $region14: #{tpu_custom_call.1} parent=1 // pred_check
      _
    $region15: #{tpu_custom_call.1} parent=1 // pred_check_branch
      %22 = sbr.rel (0) target = $region17
    $region16: #{tpu_custom_call.1} parent=1 // pred_region
      %s24 = ssub.s32 2048, 2048
      %25 = vsyncadd [#allocation3], %s24
      %s26 = sshll.u32 [#allocation2], 4
      %s27 = int_to_ptr.vmem [resolvable:$true] %s26
      %32 = dma.hbm_to_vmem [thread:$0]  %s3, 2048, %s27, [#allocation3], 256, 256, 16
    $region17: #{tpu_custom_call.1} parent=1 // pred_fallthru
      _
    // Predicated region
    $region18: #{tpu_custom_call.1} parent=1 // pred_check
      _
    $region19: #{tpu_custom_call.1} parent=1 // pred_check_branch
      %34 = sbr.rel (0) target = $region21
    $region20: #{tpu_custom_call.1} parent=1 // pred_region
      _
    $region21: #{tpu_custom_call.1} parent=1 // pred_fallthru
      _
    // Predicated region
    $region22: #{tpu_custom_call.1} parent=1 // pred_check
      _
    $region23: #{tpu_custom_call.1} parent=1 // pred_check_branch
      %36 = sbr.rel (0) target = $region25
    $region24: #{tpu_custom_call.1} parent=1 // pred_region
      _
    $region25: #{tpu_custom_call.1} parent=1 // pred_fallthru
      _
    // Predicated region
    $region26: #{tpu_custom_call.1} parent=1 // pred_check
      _
    $region27: #{tpu_custom_call.1} parent=1 // pred_check_branch
      %38 = sbr.rel (0) target = $region29
    $region28: #{tpu_custom_call.1} parent=1 // pred_region
      _
    $region29: #{tpu_custom_call.1} parent=1 // pred_fallthru
      _
    // Predicated region
    $region30: #{tpu_custom_call.1} parent=1 // pred_check
      _
    $region31: #{tpu_custom_call.1} parent=1 // pred_check_branch
      %40 = sbr.rel (0) target = $region33
    $region32: #{tpu_custom_call.1} parent=1 // pred_region
      _
    $region33: #{tpu_custom_call.1} parent=1 // pred_fallthru
      _
    // Predicated region
    $region34: #{tpu_custom_call.1} parent=1 // pred_check
      _
    $region35: #{tpu_custom_call.1} parent=1 // pred_check_branch
      %42 = sbr.rel (0) target = $region37
    $region36: #{tpu_custom_call.1} parent=1 // pred_region
      %43 = dma.done [#allocation3], 2048
    $region37: #{tpu_custom_call.1} parent=1 // pred_fallthru
      _
    %v44 = vld [vmem:[%s0] sm:$0xff]
    %v45 = vld [vmem:[%s0 + $0x8] sm:$0xff]
    %v46 = vld [vmem:[%s0 + $0x10] sm:$0xff]
    %v47 = vld [vmem:[%s0 + $0x18] sm:$0xff]
    %v48 = vld [vmem:[%s0 + $0x20] sm:$0xff]
    %v49 = vld [vmem:[%s0 + $0x28] sm:$0xff]
    %v50 = vld [vmem:[%s0 + $0x30] sm:$0xff]
    %v51 = vld [vmem:[%s0 + $0x38] sm:$0xff]
    %v52 = vld [vmem:[%s2] sm:$0xff]
    %v53 = vld [vmem:[%s2 + $0x8] sm:$0xff]
    %v54 = vld [vmem:[%s2 + $0x10] sm:$0xff]
    %v55 = vld [vmem:[%s2 + $0x18] sm:$0xff]
    %v56 = vld [vmem:[%s2 + $0x20] sm:$0xff]
    %v57 = vld [vmem:[%s2 + $0x28] sm:$0xff]
    %v58 = vld [vmem:[%s2 + $0x30] sm:$0xff]
    %v59 = vld [vmem:[%s2 + $0x38] sm:$0xff]
    %v60 = vld [vmem:[%s2 + $0x40] sm:$0xff]
    %v61 = vld [vmem:[%s2 + $0x48] sm:$0xff]
    %v62 = vld [vmem:[%s2 + $0x50] sm:$0xff]
    %v63 = vld [vmem:[%s2 + $0x58] sm:$0xff]
    %v64 = vld [vmem:[%s2 + $0x60] sm:$0xff]
    %v65 = vld [vmem:[%s2 + $0x68] sm:$0xff]
    %v66 = vld [vmem:[%s2 + $0x70] sm:$0xff]
    %v67 = vld [vmem:[%s2 + $0x78] sm:$0xff]
    %v68 = vld [vmem:[%s4] sm:$0x3]
    %v70 = vlaneseq
    %v71 = vshrl.u32 %v70, 7
    %v72 = vsub.s32 0, %v71
    %v73 = vrot.slane %v68, %v72
    %v74 = vlaneseq
    %v75 = vshrl.u32 %v74, 7
    %v76 = vsub.s32 1, %v75
    %v77 = vrot.slane %v68, %v76
    %vm80 = vcmask 523264
    %v82 = vsel %vm80, %v44, 0
    %v85 = vsel %vm80, %v45, 0
    %v88 = vsel %vm80, %v46, 0
    %v91 = vsel %vm80, %v47, 0
    %v94 = vsel %vm80, %v48, 0
    %v97 = vsel %vm80, %v49, 0
    %v100 = vsel %vm80, %v50, 0
    %v103 = vsel %vm80, %v51, 0
    %105 = vmatprep.subr.mxu0 0.0
    %106 = vmatpush1.msra.mxu0 0.0
    %107 = vmatprep.subr.mxu0 0.0
    %108 = vmatpush1.msra.mxu0 0.0
    %109 = vmatprep.subr.mxu0 0.0
    %110 = vmatpush1.msra.mxu0 0.0
    %111 = vmatprep.subr.mxu0 0.0
    %112 = vmatpush1.msra.mxu0 0.0
    %113 = vmatprep.subr.mxu0 0.0
    %114 = vmatpush1.msra.mxu0 0.0
    %115 = vmatprep.subr.mxu0 0.0
    %116 = vmatpush1.msra.mxu0 0.0
    %117 = vmatprep.subr.mxu0 0.0
    %118 = vmatpush1.msra.mxu0 0.0
    %119 = vmatprep.subr.mxu0 0.0
    %120 = vmatpush1.msra.mxu0 0.0
    %121 = vmatprep.subr.mxu0 %v67
    %122 = vmatpush1.msra.mxu0 %v66
    %123 = vmatprep.subr.mxu0 %v65
    %124 = vmatpush1.msra.mxu0 %v64
    %125 = vmatprep.subr.mxu0 %v63
    %126 = vmatpush1.msra.mxu0 %v62
    %127 = vmatprep.subr.mxu0 %v61
    %128 = vmatpush1.msra.mxu0 %v60
    %129 = vmatprep.subr.mxu0 %v59
    %130 = vmatpush1.msra.mxu0 %v58
    %131 = vmatprep.subr.mxu0 %v57
    %132 = vmatpush1.msra.mxu0 %v56
    %133 = vmatprep.subr.mxu0 %v55
    %134 = vmatpush1.msra.mxu0 %v54
    %135 = vmatprep.subr.mxu0 %v53
    %136 = vmatpush1.msra.mxu0 %v52
    %137 = vmatprep.subr.mxu0 0.0
    %138 = vmatpush2.msra.mxu0 0.0
    %139 = vmatprep.subr.mxu0 0.0
    %140 = vmatpush2.msra.mxu0 0.0
    %141 = vmatprep.subr.mxu0 0.0
    %142 = vmatpush2.msra.mxu0 0.0
    %143 = vmatprep.subr.mxu0 0.0
    %144 = vmatpush2.msra.mxu0 0.0
    %145 = vmatprep.subr.mxu0 0.0
    %146 = vmatpush2.msra.mxu0 0.0
    %147 = vmatprep.subr.mxu0 0.0
    %148 = vmatpush2.msra.mxu0 0.0
    %149 = vmatprep.subr.mxu0 0.0
    %150 = vmatpush2.msra.mxu0 0.0
    %151 = vmatprep.subr.mxu0 0.0
    %152 = vmatpush2.msra.mxu0 0.0
    %153 = vmatprep.subr.mxu0 0.0
    %154 = vmatpush2.msra.mxu0 0.0
    %155 = vmatprep.subr.mxu0 0.0
    %156 = vmatpush2.msra.mxu0 0.0
    %157 = vmatprep.subr.mxu0 0.0
    %158 = vmatpush2.msra.mxu0 0.0
    %159 = vmatprep.subr.mxu0 0.0
    %160 = vmatpush2.msra.mxu0 0.0
    %161 = vmatprep.subr.mxu0 0.0
    %162 = vmatpush2.msra.mxu0 0.0
    %163 = vmatprep.subr.mxu0 0.0
    %164 = vmatpush2.msra.mxu0 0.0
    %165 = vmatprep.subr.mxu0 0.0
    %166 = vmatpush2.msra.mxu0 0.0
    %167 = vmatprep.subr.mxu0 0.0
    %168 = vmatpush2.msra.mxu0 0.0
    %169 = vmatprep.mubr.f32.mxu0 0.0
    %170 = vmatmul.mubr.f32.gmra.mxu0 %v82
    %v171 = vpop.f32.mrf.mxu0
    %v172 = vadd.f32 %v73, %v171
    %v173 = vpop.f32.mrf.mxu0
    %v174 = vadd.f32 %v77, %v173
    %175 = vmatprep.mubr.f32.mxu0 0.0
    %176 = vmatmul.mubr.f32.gmra.mxu0 %v85
    %v177 = vpop.f32.mrf.mxu0
    %v178 = vadd.f32 %v73, %v177
    %v179 = vpop.f32.mrf.mxu0
    %v180 = vadd.f32 %v77, %v179
    %181 = vmatprep.mubr.f32.mxu0 0.0
    %182 = vmatmul.mubr.f32.gmra.mxu0 %v88
    %v183 = vpop.f32.mrf.mxu0
    %v184 = vadd.f32 %v73, %v183
    %v185 = vpop.f32.mrf.mxu0
    %v186 = vadd.f32 %v77, %v185
    %187 = vmatprep.mubr.f32.mxu0 0.0
    %188 = vmatmul.mubr.f32.gmra.mxu0 %v91
    %v189 = vpop.f32.mrf.mxu0
    %v190 = vadd.f32 %v73, %v189
    %v191 = vpop.f32.mrf.mxu0
    %v192 = vadd.f32 %v77, %v191
    %193 = vmatprep.mubr.f32.mxu0 0.0
    %194 = vmatmul.mubr.f32.gmra.mxu0 %v94
    %v195 = vpop.f32.mrf.mxu0
    %v196 = vadd.f32 %v73, %v195
    %v197 = vpop.f32.mrf.mxu0
    %v198 = vadd.f32 %v77, %v197
    %199 = vmatprep.mubr.f32.mxu0 0.0
    %200 = vmatmul.mubr.f32.gmra.mxu0 %v97
    %v201 = vpop.f32.mrf.mxu0
    %v202 = vadd.f32 %v73, %v201
    %v203 = vpop.f32.mrf.mxu0
    %v204 = vadd.f32 %v77, %v203
    %205 = vmatprep.mubr.f32.mxu0 0.0
    %206 = vmatmul.mubr.f32.gmra.mxu0 %v100
    %v207 = vpop.f32.mrf.mxu0
    %v208 = vadd.f32 %v73, %v207
    %v209 = vpop.f32.mrf.mxu0
    %v210 = vadd.f32 %v77, %v209
    %211 = vmatprep.mubr.f32.mxu0 0.0
    %212 = vmatmul.mubr.f32.gmra.mxu0 %v103
    %v213 = vpop.f32.mrf.mxu0
    %v214 = vadd.f32 %v73, %v213
    %v215 = vpop.f32.mrf.mxu0
    %v216 = vadd.f32 %v77, %v215
    %217 = vdwg.mxu0
    %v218 = vld [vmem:[#allocation2] sm:$0xff]
    %v219 = vld [vmem:[#allocation2 + $0x8] sm:$0xff]
    %v220 = vld [vmem:[#allocation2 + $0x10] sm:$0xff]
    %v221 = vld [vmem:[#allocation2 + $0x18] sm:$0xff]
    %v222 = vld [vmem:[#allocation2 + $0x20] sm:$0xff]
    %v223 = vld [vmem:[#allocation2 + $0x28] sm:$0xff]
    %v224 = vld [vmem:[#allocation2 + $0x30] sm:$0xff]
    %v225 = vld [vmem:[#allocation2 + $0x38] sm:$0xff]
    %v226 = vld [vmem:[#allocation2 + $0x40] sm:$0xff]
    %v227 = vld [vmem:[#allocation2 + $0x48] sm:$0xff]
    %v228 = vld [vmem:[#allocation2 + $0x50] sm:$0xff]
    %v229 = vld [vmem:[#allocation2 + $0x58] sm:$0xff]
    %v230 = vld [vmem:[#allocation2 + $0x60] sm:$0xff]
    %v231 = vld [vmem:[#allocation2 + $0x68] sm:$0xff]
    %v232 = vld [vmem:[#allocation2 + $0x70] sm:$0xff]
    %v233 = vld [vmem:[#allocation2 + $0x78] sm:$0xff]
    %v234 = vld [vmem:[%s5] sm:$0x1]
    %v236 = vlaneseq
    %v237 = vshrl.u32 %v236, 7
    %v238 = vsub.s32 0, %v237
    %v239 = vrot.slane %v234, %v238
    %v241 = vld [vmem:[%s1] sm:$0xff]
    %242 = vset.pattern.permute.xlu0 0
    %243 = vperm.xlu0 %242, %v241
    %v244 = vpop.permute.xlu0 %243
    %vm245 = vcmask 261120
    %v246 = vsel %vm245, 0, 7
    %v247 = vsel %vm245, 1, 4294967295
    %v249 = vsel %vm80, 0.0, 0
    %251 = vmatprep.subr.mxu0 0.0
    %252 = vmatpush1.msra.mxu0 0.0
    %253 = vmatprep.subr.mxu0 0.0
    %254 = vmatpush1.msra.mxu0 0.0
    %255 = vmatprep.subr.mxu0 0.0
    %256 = vmatpush1.msra.mxu0 0.0
    %257 = vmatprep.subr.mxu0 0.0
    %258 = vmatpush1.msra.mxu0 0.0
    %259 = vmatprep.subr.mxu0 0.0
    %260 = vmatpush1.msra.mxu0 0.0
    %261 = vmatprep.subr.mxu0 0.0
    %262 = vmatpush1.msra.mxu0 0.0
    %263 = vmatprep.subr.mxu0 0.0
    %264 = vmatpush1.msra.mxu0 0.0
    %265 = vmatprep.subr.mxu0 0.0
    %266 = vmatpush1.msra.mxu0 0.0
    %267 = vmatprep.subr.mxu0 %v233
    %268 = vmatpush1.msra.mxu0 %v232
    %269 = vmatprep.subr.mxu0 %v231
    %270 = vmatpush1.msra.mxu0 %v230
    %271 = vmatprep.subr.mxu0 %v229
    %272 = vmatpush1.msra.mxu0 %v228
    %273 = vmatprep.subr.mxu0 %v227
    %274 = vmatpush1.msra.mxu0 %v226
    %275 = vmatprep.subr.mxu0 %v225
    %276 = vmatpush1.msra.mxu0 %v224
    %277 = vmatprep.subr.mxu0 %v223
    %278 = vmatpush1.msra.mxu0 %v222
    %279 = vmatprep.subr.mxu0 %v221
    %280 = vmatpush1.msra.mxu0 %v220
    %281 = vmatprep.subr.mxu0 %v219
    %282 = vmatpush1.msra.mxu0 %v218
    %283 = vmatprep.subr.mxu0 0.0
    %284 = vmatpush2.msra.mxu0 0.0
    %285 = vmatprep.subr.mxu0 0.0
    %286 = vmatpush2.msra.mxu0 0.0
    %287 = vmatprep.subr.mxu0 0.0
    %288 = vmatpush2.msra.mxu0 0.0
    %289 = vmatprep.subr.mxu0 0.0
    %290 = vmatpush2.msra.mxu0 0.0
    %291 = vmatprep.subr.mxu0 0.0
    %292 = vmatpush2.msra.mxu0 0.0
    %293 = vmatprep.subr.mxu0 0.0
    %294 = vmatpush2.msra.mxu0 0.0
    %295 = vmatprep.subr.mxu0 0.0
    %296 = vmatpush2.msra.mxu0 0.0
    %297 = vmatprep.subr.mxu0 0.0
    %298 = vmatpush2.msra.mxu0 0.0
    %299 = vmatprep.subr.mxu0 0.0
    %300 = vmatpush2.msra.mxu0 0.0
    %301 = vmatprep.subr.mxu0 0.0
    %302 = vmatpush2.msra.mxu0 0.0
    %303 = vmatprep.subr.mxu0 0.0
    %304 = vmatpush2.msra.mxu0 0.0
    %305 = vmatprep.subr.mxu0 0.0
    %306 = vmatpush2.msra.mxu0 0.0
    %307 = vmatprep.subr.mxu0 0.0
    %308 = vmatpush2.msra.mxu0 0.0
    %309 = vmatprep.subr.mxu0 0.0
    %310 = vmatpush2.msra.mxu0 0.0
    %311 = vmatprep.subr.mxu0 0.0
    %312 = vmatpush2.msra.mxu0 0.0
    %313 = vmatprep.subr.mxu0 0.0
    %314 = vmatpush2.msra.mxu0 0.0
    %315 = vmatprep.mubr.f32.mxu0 0.0
    %316 = vmatmul.mubr.f32.gmra.mxu0 %v249
    %v317 = vpop.f32.mrf.mxu0
    %v318 = vadd.f32 0.0, %v317
    %v319 = vpop.f32.mrf.mxu0
    %v320 = vadd.f32 0.0, %v319
    %321 = vdwg.mxu0
    %v322 = vadd.f32 %v172, %v318
    %v323 = vxor.u32 %v322, 2147483648
    %v324 = vmul.f32 %v323, 1.442695
    %v325 = vpow.pop %v324
    %v326 = vadd.f32 %v325, 1.0
    %v327 = vrcp.pop %v326
    %v328 = vmul.f32 1.0, %v327
    %v329 = vadd.f32 %v320, %v239
    %v330 = vmul.f32 %v328, %v329
    %v331 = vadd.f32 %v174, %v330
    %v332 = vtanh.pop %v331
    %v333 = vsub.f32 1.0, %v328
    %335 = vrot.lane.b32.xlu0 %v332, 64
    %v336 = vpop.permute.xlu0 %335
    %v338 = vmul.f32 %v333, %v336
    %v339 = vmul.f32 %v328, 0.0
    %v340 = vadd.f32 %v338, %v339
    %v341 = vlaneseq
    %v342 = vshrl.u32 %v341, 7
    %v343 = vsub.s32 0, %v342
    %v344 = vrot.slane %v246, %v343
    %vm345 = vcmp.lt.s32.totalorder %v344, %v244
    %347 = vrot.lane.b32.xlu0 %v340, 64
    %v348 = vpop.permute.xlu0 %347
    %v350 = vsel %vm345, %v348, 0.0
    %v351 = vadd.f32 %v350, 0.0
    %v352 = vmax.f32 %v350, 0.0
    %v354 = vsel %vm80, %v350, 0
    %356 = vmatprep.subr.mxu0 0.0
    %357 = vmatpush1.msra.mxu0 0.0
    %358 = vmatprep.subr.mxu0 0.0
    %359 = vmatpush1.msra.mxu0 0.0
    %360 = vmatprep.subr.mxu0 0.0
    %361 = vmatpush1.msra.mxu0 0.0
    %362 = vmatprep.subr.mxu0 0.0
    %363 = vmatpush1.msra.mxu0 0.0
    %364 = vmatprep.subr.mxu0 0.0
    %365 = vmatpush1.msra.mxu0 0.0
    %366 = vmatprep.subr.mxu0 0.0
    %367 = vmatpush1.msra.mxu0 0.0
    %368 = vmatprep.subr.mxu0 0.0
    %369 = vmatpush1.msra.mxu0 0.0
    %370 = vmatprep.subr.mxu0 0.0
    %371 = vmatpush1.msra.mxu0 0.0
    %372 = vmatprep.subr.mxu0 %v233
    %373 = vmatpush1.msra.mxu0 %v232
    %374 = vmatprep.subr.mxu0 %v231
    %375 = vmatpush1.msra.mxu0 %v230
    %376 = vmatprep.subr.mxu0 %v229
    %377 = vmatpush1.msra.mxu0 %v228
    %378 = vmatprep.subr.mxu0 %v227
    %379 = vmatpush1.msra.mxu0 %v226
    %380 = vmatprep.subr.mxu0 %v225
    %381 = vmatpush1.msra.mxu0 %v224
    %382 = vmatprep.subr.mxu0 %v223
    %383 = vmatpush1.msra.mxu0 %v222
    %384 = vmatprep.subr.mxu0 %v221
    %385 = vmatpush1.msra.mxu0 %v220
    %386 = vmatprep.subr.mxu0 %v219
    %387 = vmatpush1.msra.mxu0 %v218
    %388 = vmatprep.subr.mxu0 0.0
    %389 = vmatpush2.msra.mxu0 0.0
    %390 = vmatprep.subr.mxu0 0.0
    %391 = vmatpush2.msra.mxu0 0.0
    %392 = vmatprep.subr.mxu0 0.0
    %393 = vmatpush2.msra.mxu0 0.0
    %394 = vmatprep.subr.mxu0 0.0
    %395 = vmatpush2.msra.mxu0 0.0
    %396 = vmatprep.subr.mxu0 0.0
    %397 = vmatpush2.msra.mxu0 0.0
    %398 = vmatprep.subr.mxu0 0.0
    %399 = vmatpush2.msra.mxu0 0.0
    %400 = vmatprep.subr.mxu0 0.0
    %401 = vmatpush2.msra.mxu0 0.0
    %402 = vmatprep.subr.mxu0 0.0
    %403 = vmatpush2.msra.mxu0 0.0
    %404 = vmatprep.subr.mxu0 0.0
    %405 = vmatpush2.msra.mxu0 0.0
    %406 = vmatprep.subr.mxu0 0.0
    %407 = vmatpush2.msra.mxu0 0.0
    %408 = vmatprep.subr.mxu0 0.0
    %409 = vmatpush2.msra.mxu0 0.0
    %410 = vmatprep.subr.mxu0 0.0
    %411 = vmatpush2.msra.mxu0 0.0
    %412 = vmatprep.subr.mxu0 0.0
    %413 = vmatpush2.msra.mxu0 0.0
    %414 = vmatprep.subr.mxu0 0.0
    %415 = vmatpush2.msra.mxu0 0.0
    %416 = vmatprep.subr.mxu0 0.0
    %417 = vmatpush2.msra.mxu0 0.0
    %418 = vmatprep.subr.mxu0 0.0
    %419 = vmatpush2.msra.mxu0 0.0
    %420 = vmatprep.mubr.f32.mxu0 0.0
    %421 = vmatmul.mubr.f32.gmra.mxu0 %v354
    %v422 = vpop.f32.mrf.mxu0
    %v423 = vadd.f32 0.0, %v422
    %v424 = vpop.f32.mrf.mxu0
    %v425 = vadd.f32 0.0, %v424
    %426 = vdwg.mxu0
    %v427 = vadd.f32 %v178, %v423
    %v428 = vxor.u32 %v427, 2147483648
    %v429 = vmul.f32 %v428, 1.442695
    %v430 = vpow.pop %v429
    %v431 = vadd.f32 %v430, 1.0
    %v432 = vrcp.pop %v431
    %v433 = vmul.f32 1.0, %v432
    %v434 = vadd.f32 %v425, %v239
    %v435 = vmul.f32 %v433, %v434
    %v436 = vadd.f32 %v180, %v435
    %v437 = vtanh.pop %v436
    %v438 = vsub.f32 1.0, %v433
    %440 = vrot.lane.b32.xlu0 %v437, 64
    %v441 = vpop.permute.xlu0 %440
    %v443 = vmul.f32 %v438, %v441
    %444 = vrot.lane.b32.xlu0 %v350, 64
    %v445 = vpop.permute.xlu0 %444
    %v447 = vmul.f32 %v433, %v445
    %v448 = vadd.f32 %v443, %v447
    %v449 = vadd.s32 %v246, %v247
    %v450 = vlaneseq
    %v451 = vshrl.u32 %v450, 7
    %v452 = vsub.s32 0, %v451
    %v453 = vrot.slane %v449, %v452
    %vm454 = vcmp.lt.s32.totalorder %v453, %v244
    %456 = vrot.lane.b32.xlu0 %v448, 64
    %v457 = vpop.permute.xlu0 %456
    %v459 = vsel %vm454, %v457, %v350
    %v460 = vsel %vm454, %v457, 0.0
    %v461 = vadd.f32 %v351, %v460
    %v462 = vmax.f32 %v352, %v460
    %v464 = vsel %vm80, %v459, 0
    %466 = vmatprep.subr.mxu0 0.0
    %467 = vmatpush1.msra.mxu0 0.0
    %468 = vmatprep.subr.mxu0 0.0
    %469 = vmatpush1.msra.mxu0 0.0
    %470 = vmatprep.subr.mxu0 0.0
    %471 = vmatpush1.msra.mxu0 0.0
    %472 = vmatprep.subr.mxu0 0.0
    %473 = vmatpush1.msra.mxu0 0.0
    %474 = vmatprep.subr.mxu0 0.0
    %475 = vmatpush1.msra.mxu0 0.0
    %476 = vmatprep.subr.mxu0 0.0
    %477 = vmatpush1.msra.mxu0 0.0
    %478 = vmatprep.subr.mxu0 0.0
    %479 = vmatpush1.msra.mxu0 0.0
    %480 = vmatprep.subr.mxu0 0.0
    %481 = vmatpush1.msra.mxu0 0.0
    %482 = vmatprep.subr.mxu0 %v233
    %483 = vmatpush1.msra.mxu0 %v232
    %484 = vmatprep.subr.mxu0 %v231
    %485 = vmatpush1.msra.mxu0 %v230
    %486 = vmatprep.subr.mxu0 %v229
    %487 = vmatpush1.msra.mxu0 %v228
    %488 = vmatprep.subr.mxu0 %v227
    %489 = vmatpush1.msra.mxu0 %v226
    %490 = vmatprep.subr.mxu0 %v225
    %491 = vmatpush1.msra.mxu0 %v224
    %492 = vmatprep.subr.mxu0 %v223
    %493 = vmatpush1.msra.mxu0 %v222
    %494 = vmatprep.subr.mxu0 %v221
    %495 = vmatpush1.msra.mxu0 %v220
    %496 = vmatprep.subr.mxu0 %v219
    %497 = vmatpush1.msra.mxu0 %v218
    %498 = vmatprep.subr.mxu0 0.0
    %499 = vmatpush2.msra.mxu0 0.0
    %500 = vmatprep.subr.mxu0 0.0
    %501 = vmatpush2.msra.mxu0 0.0
    %502 = vmatprep.subr.mxu0 0.0
    %503 = vmatpush2.msra.mxu0 0.0
    %504 = vmatprep.subr.mxu0 0.0
    %505 = vmatpush2.msra.mxu0 0.0
    %506 = vmatprep.subr.mxu0 0.0
    %507 = vmatpush2.msra.mxu0 0.0
    %508 = vmatprep.subr.mxu0 0.0
    %509 = vmatpush2.msra.mxu0 0.0
    %510 = vmatprep.subr.mxu0 0.0
    %511 = vmatpush2.msra.mxu0 0.0
    %512 = vmatprep.subr.mxu0 0.0
    %513 = vmatpush2.msra.mxu0 0.0
    %514 = vmatprep.subr.mxu0 0.0
    %515 = vmatpush2.msra.mxu0 0.0
    %516 = vmatprep.subr.mxu0 0.0
    %517 = vmatpush2.msra.mxu0 0.0
    %518 = vmatprep.subr.mxu0 0.0
    %519 = vmatpush2.msra.mxu0 0.0
    %520 = vmatprep.subr.mxu0 0.0
    %521 = vmatpush2.msra.mxu0 0.0
    %522 = vmatprep.subr.mxu0 0.0
    %523 = vmatpush2.msra.mxu0 0.0
    %524 = vmatprep.subr.mxu0 0.0
    %525 = vmatpush2.msra.mxu0 0.0
    %526 = vmatprep.subr.mxu0 0.0
    %527 = vmatpush2.msra.mxu0 0.0
    %528 = vmatprep.subr.mxu0 0.0
    %529 = vmatpush2.msra.mxu0 0.0
    %530 = vmatprep.mubr.f32.mxu0 0.0
    %531 = vmatmul.mubr.f32.gmra.mxu0 %v464
    %v532 = vpop.f32.mrf.mxu0
    %v533 = vadd.f32 0.0, %v532
    %v534 = vpop.f32.mrf.mxu0
    %v535 = vadd.f32 0.0, %v534
    %536 = vdwg.mxu0
    %v537 = vadd.f32 %v184, %v533
    %v538 = vxor.u32 %v537, 2147483648
    %v539 = vmul.f32 %v538, 1.442695
    %v540 = vpow.pop %v539
    %v541 = vadd.f32 %v540, 1.0
    %v542 = vrcp.pop %v541
    %v543 = vmul.f32 1.0, %v542
    %v544 = vadd.f32 %v535, %v239
    %v545 = vmul.f32 %v543, %v544
    %v546 = vadd.f32 %v186, %v545
    %v547 = vtanh.pop %v546
    %v548 = vsub.f32 1.0, %v543
    %550 = vrot.lane.b32.xlu0 %v547, 64
    %v551 = vpop.permute.xlu0 %550
    %v553 = vmul.f32 %v548, %v551
    %554 = vrot.lane.b32.xlu0 %v459, 64
    %v555 = vpop.permute.xlu0 %554
    %v557 = vmul.f32 %v543, %v555
    %v558 = vadd.f32 %v553, %v557
    %v559 = vmul.u32 %v247, 2
    %v560 = vadd.s32 %v246, %v559
    %v561 = vlaneseq
    %v562 = vshrl.u32 %v561, 7
    %v563 = vsub.s32 0, %v562
    %v564 = vrot.slane %v560, %v563
    %vm565 = vcmp.lt.s32.totalorder %v564, %v244
    %567 = vrot.lane.b32.xlu0 %v558, 64
    %v568 = vpop.permute.xlu0 %567
    %v570 = vsel %vm565, %v568, %v459
    %v571 = vsel %vm565, %v568, 0.0
    %v572 = vadd.f32 %v461, %v571
    %v573 = vmax.f32 %v462, %v571
    %v575 = vsel %vm80, %v570, 0
    %577 = vmatprep.subr.mxu0 0.0
    %578 = vmatpush1.msra.mxu0 0.0
    %579 = vmatprep.subr.mxu0 0.0
    %580 = vmatpush1.msra.mxu0 0.0
    %581 = vmatprep.subr.mxu0 0.0
    %582 = vmatpush1.msra.mxu0 0.0
    %583 = vmatprep.subr.mxu0 0.0
    %584 = vmatpush1.msra.mxu0 0.0
    %585 = vmatprep.subr.mxu0 0.0
    %586 = vmatpush1.msra.mxu0 0.0
    %587 = vmatprep.subr.mxu0 0.0
    %588 = vmatpush1.msra.mxu0 0.0
    %589 = vmatprep.subr.mxu0 0.0
    %590 = vmatpush1.msra.mxu0 0.0
    %591 = vmatprep.subr.mxu0 0.0
    %592 = vmatpush1.msra.mxu0 0.0
    %593 = vmatprep.subr.mxu0 %v233
    %594 = vmatpush1.msra.mxu0 %v232
    %595 = vmatprep.subr.mxu0 %v231
    %596 = vmatpush1.msra.mxu0 %v230
    %597 = vmatprep.subr.mxu0 %v229
    %598 = vmatpush1.msra.mxu0 %v228
    %599 = vmatprep.subr.mxu0 %v227
    %600 = vmatpush1.msra.mxu0 %v226
    %601 = vmatprep.subr.mxu0 %v225
    %602 = vmatpush1.msra.mxu0 %v224
    %603 = vmatprep.subr.mxu0 %v223
    %604 = vmatpush1.msra.mxu0 %v222
    %605 = vmatprep.subr.mxu0 %v221
    %606 = vmatpush1.msra.mxu0 %v220
    %607 = vmatprep.subr.mxu0 %v219
    %608 = vmatpush1.msra.mxu0 %v218
    %609 = vmatprep.subr.mxu0 0.0
    %610 = vmatpush2.msra.mxu0 0.0
    %611 = vmatprep.subr.mxu0 0.0
    %612 = vmatpush2.msra.mxu0 0.0
    %613 = vmatprep.subr.mxu0 0.0
    %614 = vmatpush2.msra.mxu0 0.0
    %615 = vmatprep.subr.mxu0 0.0
    %616 = vmatpush2.msra.mxu0 0.0
    %617 = vmatprep.subr.mxu0 0.0
    %618 = vmatpush2.msra.mxu0 0.0
    %619 = vmatprep.subr.mxu0 0.0
    %620 = vmatpush2.msra.mxu0 0.0
    %621 = vmatprep.subr.mxu0 0.0
    %622 = vmatpush2.msra.mxu0 0.0
    %623 = vmatprep.subr.mxu0 0.0
    %624 = vmatpush2.msra.mxu0 0.0
    %625 = vmatprep.subr.mxu0 0.0
    %626 = vmatpush2.msra.mxu0 0.0
    %627 = vmatprep.subr.mxu0 0.0
    %628 = vmatpush2.msra.mxu0 0.0
    %629 = vmatprep.subr.mxu0 0.0
    %630 = vmatpush2.msra.mxu0 0.0
    %631 = vmatprep.subr.mxu0 0.0
    %632 = vmatpush2.msra.mxu0 0.0
    %633 = vmatprep.subr.mxu0 0.0
    %634 = vmatpush2.msra.mxu0 0.0
    %635 = vmatprep.subr.mxu0 0.0
    %636 = vmatpush2.msra.mxu0 0.0
    %637 = vmatprep.subr.mxu0 0.0
    %638 = vmatpush2.msra.mxu0 0.0
    %639 = vmatprep.subr.mxu0 0.0
    %640 = vmatpush2.msra.mxu0 0.0
    %641 = vmatprep.mubr.f32.mxu0 0.0
    %642 = vmatmul.mubr.f32.gmra.mxu0 %v575
    %v643 = vpop.f32.mrf.mxu0
    %v644 = vadd.f32 0.0, %v643
    %v645 = vpop.f32.mrf.mxu0
    %v646 = vadd.f32 0.0, %v645
    %647 = vdwg.mxu0
    %v648 = vadd.f32 %v190, %v644
    %v649 = vxor.u32 %v648, 2147483648
    %v650 = vmul.f32 %v649, 1.442695
    %v651 = vpow.pop %v650
    %v652 = vadd.f32 %v651, 1.0
    %v653 = vrcp.pop %v652
    %v654 = vmul.f32 1.0, %v653
    %v655 = vadd.f32 %v646, %v239
    %v656 = vmul.f32 %v654, %v655
    %v657 = vadd.f32 %v192, %v656
    %v658 = vtanh.pop %v657
    %v659 = vsub.f32 1.0, %v654
    %661 = vrot.lane.b32.xlu0 %v658, 64
    %v662 = vpop.permute.xlu0 %661
    %v664 = vmul.f32 %v659, %v662
    %665 = vrot.lane.b32.xlu0 %v570, 64
    %v666 = vpop.permute.xlu0 %665
    %v668 = vmul.f32 %v654, %v666
    %v669 = vadd.f32 %v664, %v668
    %v670 = vmul.u32 %v247, 3
    %v671 = vadd.s32 %v246, %v670
    %v672 = vlaneseq
    %v673 = vshrl.u32 %v672, 7
    %v674 = vsub.s32 0, %v673
    %v675 = vrot.slane %v671, %v674
    %vm676 = vcmp.lt.s32.totalorder %v675, %v244
    %678 = vrot.lane.b32.xlu0 %v669, 64
    %v679 = vpop.permute.xlu0 %678
    %v681 = vsel %vm676, %v679, %v570
    %v682 = vsel %vm676, %v679, 0.0
    %v683 = vadd.f32 %v572, %v682
    %v684 = vmax.f32 %v573, %v682
    %v686 = vsel %vm80, %v681, 0
    %688 = vmatprep.subr.mxu0 0.0
    %689 = vmatpush1.msra.mxu0 0.0
    %690 = vmatprep.subr.mxu0 0.0
    %691 = vmatpush1.msra.mxu0 0.0
    %692 = vmatprep.subr.mxu0 0.0
    %693 = vmatpush1.msra.mxu0 0.0
    %694 = vmatprep.subr.mxu0 0.0
    %695 = vmatpush1.msra.mxu0 0.0
    %696 = vmatprep.subr.mxu0 0.0
    %697 = vmatpush1.msra.mxu0 0.0
    %698 = vmatprep.subr.mxu0 0.0
    %699 = vmatpush1.msra.mxu0 0.0
    %700 = vmatprep.subr.mxu0 0.0
    %701 = vmatpush1.msra.mxu0 0.0
    %702 = vmatprep.subr.mxu0 0.0
    %703 = vmatpush1.msra.mxu0 0.0
    %704 = vmatprep.subr.mxu0 %v233
    %705 = vmatpush1.msra.mxu0 %v232
    %706 = vmatprep.subr.mxu0 %v231
    %707 = vmatpush1.msra.mxu0 %v230
    %708 = vmatprep.subr.mxu0 %v229
    %709 = vmatpush1.msra.mxu0 %v228
    %710 = vmatprep.subr.mxu0 %v227
    %711 = vmatpush1.msra.mxu0 %v226
    %712 = vmatprep.subr.mxu0 %v225
    %713 = vmatpush1.msra.mxu0 %v224
    %714 = vmatprep.subr.mxu0 %v223
    %715 = vmatpush1.msra.mxu0 %v222
    %716 = vmatprep.subr.mxu0 %v221
    %717 = vmatpush1.msra.mxu0 %v220
    %718 = vmatprep.subr.mxu0 %v219
    %719 = vmatpush1.msra.mxu0 %v218
    %720 = vmatprep.subr.mxu0 0.0
    %721 = vmatpush2.msra.mxu0 0.0
    %722 = vmatprep.subr.mxu0 0.0
    %723 = vmatpush2.msra.mxu0 0.0
    %724 = vmatprep.subr.mxu0 0.0
    %725 = vmatpush2.msra.mxu0 0.0
    %726 = vmatprep.subr.mxu0 0.0
    %727 = vmatpush2.msra.mxu0 0.0
    %728 = vmatprep.subr.mxu0 0.0
    %729 = vmatpush2.msra.mxu0 0.0
    %730 = vmatprep.subr.mxu0 0.0
    %731 = vmatpush2.msra.mxu0 0.0
    %732 = vmatprep.subr.mxu0 0.0
    %733 = vmatpush2.msra.mxu0 0.0
    %734 = vmatprep.subr.mxu0 0.0
    %735 = vmatpush2.msra.mxu0 0.0
    %736 = vmatprep.subr.mxu0 0.0
    %737 = vmatpush2.msra.mxu0 0.0
    %738 = vmatprep.subr.mxu0 0.0
    %739 = vmatpush2.msra.mxu0 0.0
    %740 = vmatprep.subr.mxu0 0.0
    %741 = vmatpush2.msra.mxu0 0.0
    %742 = vmatprep.subr.mxu0 0.0
    %743 = vmatpush2.msra.mxu0 0.0
    %744 = vmatprep.subr.mxu0 0.0
    %745 = vmatpush2.msra.mxu0 0.0
    %746 = vmatprep.subr.mxu0 0.0
    %747 = vmatpush2.msra.mxu0 0.0
    %748 = vmatprep.subr.mxu0 0.0
    %749 = vmatpush2.msra.mxu0 0.0
    %750 = vmatprep.subr.mxu0 0.0
    %751 = vmatpush2.msra.mxu0 0.0
    %752 = vmatprep.mubr.f32.mxu0 0.0
    %753 = vmatmul.mubr.f32.gmra.mxu0 %v686
    %v754 = vpop.f32.mrf.mxu0
    %v755 = vadd.f32 0.0, %v754
    %v756 = vpop.f32.mrf.mxu0
    %v757 = vadd.f32 0.0, %v756
    %758 = vdwg.mxu0
    %v759 = vadd.f32 %v196, %v755
    %v760 = vxor.u32 %v759, 2147483648
    %v761 = vmul.f32 %v760, 1.442695
    %v762 = vpow.pop %v761
    %v763 = vadd.f32 %v762, 1.0
    %v764 = vrcp.pop %v763
    %v765 = vmul.f32 1.0, %v764
    %v766 = vadd.f32 %v757, %v239
    %v767 = vmul.f32 %v765, %v766
    %v768 = vadd.f32 %v198, %v767
    %v769 = vtanh.pop %v768
    %v770 = vsub.f32 1.0, %v765
    %772 = vrot.lane.b32.xlu0 %v769, 64
    %v773 = vpop.permute.xlu0 %772
    %v775 = vmul.f32 %v770, %v773
    %776 = vrot.lane.b32.xlu0 %v681, 64
    %v777 = vpop.permute.xlu0 %776
    %v779 = vmul.f32 %v765, %v777
    %v780 = vadd.f32 %v775, %v779
    %v781 = vmul.u32 %v247, 4
    %v782 = vadd.s32 %v246, %v781
    %v783 = vlaneseq
    %v784 = vshrl.u32 %v783, 7
    %v785 = vsub.s32 0, %v784
    %v786 = vrot.slane %v782, %v785
    %vm787 = vcmp.lt.s32.totalorder %v786, %v244
    %789 = vrot.lane.b32.xlu0 %v780, 64
    %v790 = vpop.permute.xlu0 %789
    %v792 = vsel %vm787, %v790, %v681
    %v793 = vsel %vm787, %v790, 0.0
    %v794 = vadd.f32 %v683, %v793
    %v795 = vmax.f32 %v684, %v793
    %v797 = vsel %vm80, %v792, 0
    %799 = vmatprep.subr.mxu0 0.0
    %800 = vmatpush1.msra.mxu0 0.0
    %801 = vmatprep.subr.mxu0 0.0
    %802 = vmatpush1.msra.mxu0 0.0
    %803 = vmatprep.subr.mxu0 0.0
    %804 = vmatpush1.msra.mxu0 0.0
    %805 = vmatprep.subr.mxu0 0.0
    %806 = vmatpush1.msra.mxu0 0.0
    %807 = vmatprep.subr.mxu0 0.0
    %808 = vmatpush1.msra.mxu0 0.0
    %809 = vmatprep.subr.mxu0 0.0
    %810 = vmatpush1.msra.mxu0 0.0
    %811 = vmatprep.subr.mxu0 0.0
    %812 = vmatpush1.msra.mxu0 0.0
    %813 = vmatprep.subr.mxu0 0.0
    %814 = vmatpush1.msra.mxu0 0.0
    %815 = vmatprep.subr.mxu0 %v233
    %816 = vmatpush1.msra.mxu0 %v232
    %817 = vmatprep.subr.mxu0 %v231
    %818 = vmatpush1.msra.mxu0 %v230
    %819 = vmatprep.subr.mxu0 %v229
    %820 = vmatpush1.msra.mxu0 %v228
    %821 = vmatprep.subr.mxu0 %v227
    %822 = vmatpush1.msra.mxu0 %v226
    %823 = vmatprep.subr.mxu0 %v225
    %824 = vmatpush1.msra.mxu0 %v224
    %825 = vmatprep.subr.mxu0 %v223
    %826 = vmatpush1.msra.mxu0 %v222
    %827 = vmatprep.subr.mxu0 %v221
    %828 = vmatpush1.msra.mxu0 %v220
    %829 = vmatprep.subr.mxu0 %v219
    %830 = vmatpush1.msra.mxu0 %v218
    %831 = vmatprep.subr.mxu0 0.0
    %832 = vmatpush2.msra.mxu0 0.0
    %833 = vmatprep.subr.mxu0 0.0
    %834 = vmatpush2.msra.mxu0 0.0
    %835 = vmatprep.subr.mxu0 0.0
    %836 = vmatpush2.msra.mxu0 0.0
    %837 = vmatprep.subr.mxu0 0.0
    %838 = vmatpush2.msra.mxu0 0.0
    %839 = vmatprep.subr.mxu0 0.0
    %840 = vmatpush2.msra.mxu0 0.0
    %841 = vmatprep.subr.mxu0 0.0
    %842 = vmatpush2.msra.mxu0 0.0
    %843 = vmatprep.subr.mxu0 0.0
    %844 = vmatpush2.msra.mxu0 0.0
    %845 = vmatprep.subr.mxu0 0.0
    %846 = vmatpush2.msra.mxu0 0.0
    %847 = vmatprep.subr.mxu0 0.0
    %848 = vmatpush2.msra.mxu0 0.0
    %849 = vmatprep.subr.mxu0 0.0
    %850 = vmatpush2.msra.mxu0 0.0
    %851 = vmatprep.subr.mxu0 0.0
    %852 = vmatpush2.msra.mxu0 0.0
    %853 = vmatprep.subr.mxu0 0.0
    %854 = vmatpush2.msra.mxu0 0.0
    %855 = vmatprep.subr.mxu0 0.0
    %856 = vmatpush2.msra.mxu0 0.0
    %857 = vmatprep.subr.mxu0 0.0
    %858 = vmatpush2.msra.mxu0 0.0
    %859 = vmatprep.subr.mxu0 0.0
    %860 = vmatpush2.msra.mxu0 0.0
    %861 = vmatprep.subr.mxu0 0.0
    %862 = vmatpush2.msra.mxu0 0.0
    %863 = vmatprep.mubr.f32.mxu0 0.0
    %864 = vmatmul.mubr.f32.gmra.mxu0 %v797
    %v865 = vpop.f32.mrf.mxu0
    %v866 = vadd.f32 0.0, %v865
    %v867 = vpop.f32.mrf.mxu0
    %v868 = vadd.f32 0.0, %v867
    %869 = vdwg.mxu0
    %v870 = vadd.f32 %v202, %v866
    %v871 = vxor.u32 %v870, 2147483648
    %v872 = vmul.f32 %v871, 1.442695
    %v873 = vpow.pop %v872
    %v874 = vadd.f32 %v873, 1.0
    %v875 = vrcp.pop %v874
    %v876 = vmul.f32 1.0, %v875
    %v877 = vadd.f32 %v868, %v239
    %v878 = vmul.f32 %v876, %v877
    %v879 = vadd.f32 %v204, %v878
    %v880 = vtanh.pop %v879
    %v881 = vsub.f32 1.0, %v876
    %883 = vrot.lane.b32.xlu0 %v880, 64
    %v884 = vpop.permute.xlu0 %883
    %v886 = vmul.f32 %v881, %v884
    %887 = vrot.lane.b32.xlu0 %v792, 64
    %v888 = vpop.permute.xlu0 %887
    %v890 = vmul.f32 %v876, %v888
    %v891 = vadd.f32 %v886, %v890
    %v892 = vmul.u32 %v247, 5
    %v893 = vadd.s32 %v246, %v892
    %v894 = vlaneseq
    %v895 = vshrl.u32 %v894, 7
    %v896 = vsub.s32 0, %v895
    %v897 = vrot.slane %v893, %v896
    %vm898 = vcmp.lt.s32.totalorder %v897, %v244
    %900 = vrot.lane.b32.xlu0 %v891, 64
    %v901 = vpop.permute.xlu0 %900
    %v903 = vsel %vm898, %v901, %v792
    %v904 = vsel %vm898, %v901, 0.0
    %v905 = vadd.f32 %v794, %v904
    %v906 = vmax.f32 %v795, %v904
    %v908 = vsel %vm80, %v903, 0
    %910 = vmatprep.subr.mxu0 0.0
    %911 = vmatpush1.msra.mxu0 0.0
    %912 = vmatprep.subr.mxu0 0.0
    %913 = vmatpush1.msra.mxu0 0.0
    %914 = vmatprep.subr.mxu0 0.0
    %915 = vmatpush1.msra.mxu0 0.0
    %916 = vmatprep.subr.mxu0 0.0
    %917 = vmatpush1.msra.mxu0 0.0
    %918 = vmatprep.subr.mxu0 0.0
    %919 = vmatpush1.msra.mxu0 0.0
    %920 = vmatprep.subr.mxu0 0.0
    %921 = vmatpush1.msra.mxu0 0.0
    %922 = vmatprep.subr.mxu0 0.0
    %923 = vmatpush1.msra.mxu0 0.0
    %924 = vmatprep.subr.mxu0 0.0
    %925 = vmatpush1.msra.mxu0 0.0
    %926 = vmatprep.subr.mxu0 %v233
    %927 = vmatpush1.msra.mxu0 %v232
    %928 = vmatprep.subr.mxu0 %v231
    %929 = vmatpush1.msra.mxu0 %v230
    %930 = vmatprep.subr.mxu0 %v229
    %931 = vmatpush1.msra.mxu0 %v228
    %932 = vmatprep.subr.mxu0 %v227
    %933 = vmatpush1.msra.mxu0 %v226
    %934 = vmatprep.subr.mxu0 %v225
    %935 = vmatpush1.msra.mxu0 %v224
    %936 = vmatprep.subr.mxu0 %v223
    %937 = vmatpush1.msra.mxu0 %v222
    %938 = vmatprep.subr.mxu0 %v221
    %939 = vmatpush1.msra.mxu0 %v220
    %940 = vmatprep.subr.mxu0 %v219
    %941 = vmatpush1.msra.mxu0 %v218
    %942 = vmatprep.subr.mxu0 0.0
    %943 = vmatpush2.msra.mxu0 0.0
    %944 = vmatprep.subr.mxu0 0.0
    %945 = vmatpush2.msra.mxu0 0.0
    %946 = vmatprep.subr.mxu0 0.0
    %947 = vmatpush2.msra.mxu0 0.0
    %948 = vmatprep.subr.mxu0 0.0
    %949 = vmatpush2.msra.mxu0 0.0
    %950 = vmatprep.subr.mxu0 0.0
    %951 = vmatpush2.msra.mxu0 0.0
    %952 = vmatprep.subr.mxu0 0.0
    %953 = vmatpush2.msra.mxu0 0.0
    %954 = vmatprep.subr.mxu0 0.0
    %955 = vmatpush2.msra.mxu0 0.0
    %956 = vmatprep.subr.mxu0 0.0
    %957 = vmatpush2.msra.mxu0 0.0
    %958 = vmatprep.subr.mxu0 0.0
    %959 = vmatpush2.msra.mxu0 0.0
    %960 = vmatprep.subr.mxu0 0.0
    %961 = vmatpush2.msra.mxu0 0.0
    %962 = vmatprep.subr.mxu0 0.0
    %963 = vmatpush2.msra.mxu0 0.0
    %964 = vmatprep.subr.mxu0 0.0
    %965 = vmatpush2.msra.mxu0 0.0
    %966 = vmatprep.subr.mxu0 0.0
    %967 = vmatpush2.msra.mxu0 0.0
    %968 = vmatprep.subr.mxu0 0.0
    %969 = vmatpush2.msra.mxu0 0.0
    %970 = vmatprep.subr.mxu0 0.0
    %971 = vmatpush2.msra.mxu0 0.0
    %972 = vmatprep.subr.mxu0 0.0
    %973 = vmatpush2.msra.mxu0 0.0
    %974 = vmatprep.mubr.f32.mxu0 0.0
    %975 = vmatmul.mubr.f32.gmra.mxu0 %v908
    %v976 = vpop.f32.mrf.mxu0
    %v977 = vadd.f32 0.0, %v976
    %v978 = vpop.f32.mrf.mxu0
    %v979 = vadd.f32 0.0, %v978
    %980 = vdwg.mxu0
    %v981 = vadd.f32 %v208, %v977
    %v982 = vxor.u32 %v981, 2147483648
    %v983 = vmul.f32 %v982, 1.442695
    %v984 = vpow.pop %v983
    %v985 = vadd.f32 %v984, 1.0
    %v986 = vrcp.pop %v985
    %v987 = vmul.f32 1.0, %v986
    %v988 = vadd.f32 %v979, %v239
    %v989 = vmul.f32 %v987, %v988
    %v990 = vadd.f32 %v210, %v989
    %v991 = vtanh.pop %v990
    %v992 = vsub.f32 1.0, %v987
    %994 = vrot.lane.b32.xlu0 %v991, 64
    %v995 = vpop.permute.xlu0 %994
    %v997 = vmul.f32 %v992, %v995
    %998 = vrot.lane.b32.xlu0 %v903, 64
    %v999 = vpop.permute.xlu0 %998
    %v1001 = vmul.f32 %v987, %v999
    %v1002 = vadd.f32 %v997, %v1001
    %v1003 = vmul.u32 %v247, 6
    %v1004 = vadd.s32 %v246, %v1003
    %v1005 = vlaneseq
    %v1006 = vshrl.u32 %v1005, 7
    %v1007 = vsub.s32 0, %v1006
    %v1008 = vrot.slane %v1004, %v1007
    %vm1009 = vcmp.lt.s32.totalorder %v1008, %v244
    %1011 = vrot.lane.b32.xlu0 %v1002, 64
    %v1012 = vpop.permute.xlu0 %1011
    %v1014 = vsel %vm1009, %v1012, %v903
    %v1015 = vsel %vm1009, %v1012, 0.0
    %v1016 = vadd.f32 %v905, %v1015
    %v1017 = vmax.f32 %v906, %v1015
    %v1019 = vsel %vm80, %v1014, 0
    %1021 = vmatprep.subr.mxu0 0.0
    %1022 = vmatpush1.msra.mxu0 0.0
    %1023 = vmatprep.subr.mxu0 0.0
    %1024 = vmatpush1.msra.mxu0 0.0
    %1025 = vmatprep.subr.mxu0 0.0
    %1026 = vmatpush1.msra.mxu0 0.0
    %1027 = vmatprep.subr.mxu0 0.0
    %1028 = vmatpush1.msra.mxu0 0.0
    %1029 = vmatprep.subr.mxu0 0.0
    %1030 = vmatpush1.msra.mxu0 0.0
    %1031 = vmatprep.subr.mxu0 0.0
    %1032 = vmatpush1.msra.mxu0 0.0
    %1033 = vmatprep.subr.mxu0 0.0
    %1034 = vmatpush1.msra.mxu0 0.0
    %1035 = vmatprep.subr.mxu0 0.0
    %1036 = vmatpush1.msra.mxu0 0.0
    %1037 = vmatprep.subr.mxu0 %v233
    %1038 = vmatpush1.msra.mxu0 %v232
    %1039 = vmatprep.subr.mxu0 %v231
    %1040 = vmatpush1.msra.mxu0 %v230
    %1041 = vmatprep.subr.mxu0 %v229
    %1042 = vmatpush1.msra.mxu0 %v228
    %1043 = vmatprep.subr.mxu0 %v227
    %1044 = vmatpush1.msra.mxu0 %v226
    %1045 = vmatprep.subr.mxu0 %v225
    %1046 = vmatpush1.msra.mxu0 %v224
    %1047 = vmatprep.subr.mxu0 %v223
    %1048 = vmatpush1.msra.mxu0 %v222
    %1049 = vmatprep.subr.mxu0 %v221
    %1050 = vmatpush1.msra.mxu0 %v220
    %1051 = vmatprep.subr.mxu0 %v219
    %1052 = vmatpush1.msra.mxu0 %v218
    %1053 = vmatprep.subr.mxu0 0.0
    %1054 = vmatpush2.msra.mxu0 0.0
    %1055 = vmatprep.subr.mxu0 0.0
    %1056 = vmatpush2.msra.mxu0 0.0
    %1057 = vmatprep.subr.mxu0 0.0
    %1058 = vmatpush2.msra.mxu0 0.0
    %1059 = vmatprep.subr.mxu0 0.0
    %1060 = vmatpush2.msra.mxu0 0.0
    %1061 = vmatprep.subr.mxu0 0.0
    %1062 = vmatpush2.msra.mxu0 0.0
    %1063 = vmatprep.subr.mxu0 0.0
    %1064 = vmatpush2.msra.mxu0 0.0
    %1065 = vmatprep.subr.mxu0 0.0
    %1066 = vmatpush2.msra.mxu0 0.0
    %1067 = vmatprep.subr.mxu0 0.0
    %1068 = vmatpush2.msra.mxu0 0.0
    %1069 = vmatprep.subr.mxu0 0.0
    %1070 = vmatpush2.msra.mxu0 0.0
    %1071 = vmatprep.subr.mxu0 0.0
    %1072 = vmatpush2.msra.mxu0 0.0
    %1073 = vmatprep.subr.mxu0 0.0
    %1074 = vmatpush2.msra.mxu0 0.0
    %1075 = vmatprep.subr.mxu0 0.0
    %1076 = vmatpush2.msra.mxu0 0.0
    %1077 = vmatprep.subr.mxu0 0.0
    %1078 = vmatpush2.msra.mxu0 0.0
    %1079 = vmatprep.subr.mxu0 0.0
    %1080 = vmatpush2.msra.mxu0 0.0
    %1081 = vmatprep.subr.mxu0 0.0
    %1082 = vmatpush2.msra.mxu0 0.0
    %1083 = vmatprep.subr.mxu0 0.0
    %1084 = vmatpush2.msra.mxu0 0.0
    %1085 = vmatprep.mubr.f32.mxu0 0.0
    %1086 = vmatmul.mubr.f32.gmra.mxu0 %v1019
    %v1087 = vpop.f32.mrf.mxu0
    %v1088 = vadd.f32 0.0, %v1087
    %v1089 = vpop.f32.mrf.mxu0
    %v1090 = vadd.f32 0.0, %v1089
    %1091 = vdwg.mxu0
    %v1092 = vadd.f32 %v214, %v1088
    %v1093 = vxor.u32 %v1092, 2147483648
    %v1094 = vmul.f32 %v1093, 1.442695
    %v1095 = vpow.pop %v1094
    %v1096 = vadd.f32 %v1095, 1.0
    %v1097 = vrcp.pop %v1096
    %v1098 = vmul.f32 1.0, %v1097
    %v1099 = vadd.f32 %v1090, %v239
    %v1100 = vmul.f32 %v1098, %v1099
    %v1101 = vadd.f32 %v216, %v1100
    %v1102 = vtanh.pop %v1101
    %v1103 = vsub.f32 1.0, %v1098
    %1105 = vrot.lane.b32.xlu0 %v1102, 64
    %v1106 = vpop.permute.xlu0 %1105
    %v1108 = vmul.f32 %v1103, %v1106
    %1109 = vrot.lane.b32.xlu0 %v1014, 64
    %v1110 = vpop.permute.xlu0 %1109
    %v1112 = vmul.f32 %v1098, %v1110
    %v1113 = vadd.f32 %v1108, %v1112
    %v1114 = vmul.u32 %v247, 7
    %v1115 = vadd.s32 %v246, %v1114
    %v1116 = vlaneseq
    %v1117 = vshrl.u32 %v1116, 7
    %v1118 = vsub.s32 0, %v1117
    %v1119 = vrot.slane %v1115, %v1118
    %vm1120 = vcmp.lt.s32.totalorder %v1119, %v244
    %1122 = vrot.lane.b32.xlu0 %v1113, 64
    %v1123 = vpop.permute.xlu0 %1122
    %v1125 = vsel %vm1120, %v1123, %v1014
    %v1126 = vsel %vm1120, %v1123, 0.0
    %v1127 = vadd.f32 %v1016, %v1126
    %v1128 = vmax.f32 %v1017, %v1126
    %v1129 = vmul.f32 %v1127, 0.125
    %1131 = vrot.lane.b32.xlu0 %v1129, 64
    %v1132 = vpop.permute.xlu0 %1131
    %v1134 = vsel %vm80, %v1125, %v1132
    %v1135 = vmax.f32 %v1134, 0.0
    %v1136 = vmax.f32 %v1128, 0.0
    %v1137 = vld [vmem:[%s6] sm:$0xff]
    %v1138 = vld [vmem:[%s6 + $0x8] sm:$0xff]
    %v1139 = vld [vmem:[%s6 + $0x10] sm:$0xff]
    %v1140 = vld [vmem:[%s6 + $0x18] sm:$0xff]
    %v1141 = vld [vmem:[%s6 + $0x20] sm:$0xff]
    %v1142 = vld [vmem:[%s6 + $0x28] sm:$0xff]
    %v1143 = vld [vmem:[%s6 + $0x30] sm:$0xff]
    %v1144 = vld [vmem:[%s6 + $0x38] sm:$0xff]
    %v1145 = vld [vmem:[%s6 + $0x40] sm:$0xff]
    %v1146 = vld [vmem:[%s6 + $0x48] sm:$0xff]
    %v1147 = vld [vmem:[%s6 + $0x50] sm:$0xff]
    %v1148 = vld [vmem:[%s6 + $0x58] sm:$0xff]
    %v1149 = vld [vmem:[%s6 + $0x60] sm:$0xff]
    %v1150 = vld [vmem:[%s6 + $0x68] sm:$0xff]
    %v1151 = vld [vmem:[%s6 + $0x70] sm:$0xff]
    %v1152 = vld [vmem:[%s6 + $0x78] sm:$0xff]
    %v1153 = vld [vmem:[%s6 + $0x80] sm:$0xff]
    %v1154 = vld [vmem:[%s6 + $0x88] sm:$0xff]
    %v1155 = vld [vmem:[%s6 + $0x90] sm:$0xff]
    %v1156 = vld [vmem:[%s6 + $0x98] sm:$0xff]
    %v1157 = vld [vmem:[%s6 + $0xa0] sm:$0xff]
    %v1158 = vld [vmem:[%s6 + $0xa8] sm:$0xff]
    %v1159 = vld [vmem:[%s6 + $0xb0] sm:$0xff]
    %v1160 = vld [vmem:[%s6 + $0xb8] sm:$0xff]
    %v1161 = vld [vmem:[%s7] sm:$0x1]
    %v1163 = vlaneseq
    %v1164 = vshrl.u32 %v1163, 7
    %v1165 = vsub.s32 0, %v1164
    %v1166 = vrot.slane %v1161, %v1165
    %v1169 = vsel %vm80, %v1136, 0
    %1171 = vmatprep.subr.mxu0 0.0
    %1172 = vmatpush1.msra.mxu0 %v1152
    %1173 = vmatprep.subr.mxu0 0.0
    %1174 = vmatpush1.msra.mxu0 %v1151
    %1175 = vmatprep.subr.mxu0 0.0
    %1176 = vmatpush1.msra.mxu0 %v1150
    %1177 = vmatprep.subr.mxu0 0.0
    %1178 = vmatpush1.msra.mxu0 %v1149
    %1179 = vmatprep.subr.mxu0 0.0
    %1180 = vmatpush1.msra.mxu0 %v1148
    %1181 = vmatprep.subr.mxu0 0.0
    %1182 = vmatpush1.msra.mxu0 %v1147
    %1183 = vmatprep.subr.mxu0 0.0
    %1184 = vmatpush1.msra.mxu0 %v1146
    %1185 = vmatprep.subr.mxu0 0.0
    %1186 = vmatpush1.msra.mxu0 %v1145
    %1187 = vmatprep.subr.mxu0 0.0
    %1188 = vmatpush1.msra.mxu0 %v1144
    %1189 = vmatprep.subr.mxu0 0.0
    %1190 = vmatpush1.msra.mxu0 %v1143
    %1191 = vmatprep.subr.mxu0 0.0
    %1192 = vmatpush1.msra.mxu0 %v1142
    %1193 = vmatprep.subr.mxu0 0.0
    %1194 = vmatpush1.msra.mxu0 %v1141
    %1195 = vmatprep.subr.mxu0 0.0
    %1196 = vmatpush1.msra.mxu0 %v1140
    %1197 = vmatprep.subr.mxu0 0.0
    %1198 = vmatpush1.msra.mxu0 %v1139
    %1199 = vmatprep.subr.mxu0 0.0
    %1200 = vmatpush1.msra.mxu0 %v1138
    %1201 = vmatprep.subr.mxu0 0.0
    %1202 = vmatpush1.msra.mxu0 %v1137
    %1203 = vmatprep.subr.mxu0 0.0
    %1204 = vmatpush2.msra.mxu0 0.0
    %1205 = vmatprep.subr.mxu0 0.0
    %1206 = vmatpush2.msra.mxu0 0.0
    %1207 = vmatprep.subr.mxu0 0.0
    %1208 = vmatpush2.msra.mxu0 0.0
    %1209 = vmatprep.subr.mxu0 0.0
    %1210 = vmatpush2.msra.mxu0 0.0
    %1211 = vmatprep.subr.mxu0 0.0
    %1212 = vmatpush2.msra.mxu0 0.0
    %1213 = vmatprep.subr.mxu0 0.0
    %1214 = vmatpush2.msra.mxu0 0.0
    %1215 = vmatprep.subr.mxu0 0.0
    %1216 = vmatpush2.msra.mxu0 0.0
    %1217 = vmatprep.subr.mxu0 0.0
    %1218 = vmatpush2.msra.mxu0 0.0
    %1219 = vmatprep.subr.mxu0 0.0
    %1220 = vmatpush2.msra.mxu0 %v1160
    %1221 = vmatprep.subr.mxu0 0.0
    %1222 = vmatpush2.msra.mxu0 %v1159
    %1223 = vmatprep.subr.mxu0 0.0
    %1224 = vmatpush2.msra.mxu0 %v1158
    %1225 = vmatprep.subr.mxu0 0.0
    %1226 = vmatpush2.msra.mxu0 %v1157
    %1227 = vmatprep.subr.mxu0 0.0
    %1228 = vmatpush2.msra.mxu0 %v1156
    %1229 = vmatprep.subr.mxu0 0.0
    %1230 = vmatpush2.msra.mxu0 %v1155
    %1231 = vmatprep.subr.mxu0 0.0
    %1232 = vmatpush2.msra.mxu0 %v1154
    %1233 = vmatprep.subr.mxu0 0.0
    %1234 = vmatpush2.msra.mxu0 %v1153
    %1235 = vmatprep.mubr.f32.mxu0 %v1169
    %1236 = vmatmul.mubr.f32.gmra.mxu0 %v1135
    %v1237 = vpop.f32.mrf.mxu0
    %v1238 = vadd.f32 %v1166, %v1237
    %v1239 = vpop.f32.mrf.mxu0
    %1240 = vdwg.mxu0
    %vm1241 = vcmask 64512
    %1242 = vst.msk [vmem:[#allocation5] sm:$0xff] %vm1241, %v1238
    // Predicated region
    $region38: #{tpu_custom_call.1} parent=1 // pred_check
      _
    $region39: #{tpu_custom_call.1} parent=1 // pred_check_branch
      %1244 = sbr.rel (0) target = $region41
    $region40: #{tpu_custom_call.1} parent=1 // pred_region
      %s1246 = ssub.s32 128, 128
      %1247 = vsyncadd [#allocation4], %s1246
      %s1249 = sshll.u32 [#allocation5], 4
      %s1250 = int_to_ptr.vmem [resolvable:$true] %s1249
      %1252 = dma.vmem_to_hbm [thread:$0]  %s1250, 128, %s8, [#allocation4]
    $region41: #{tpu_custom_call.1} parent=1 // pred_fallthru
      _
    // Predicated region
    $region42: #{tpu_custom_call.1} parent=1 // pred_check
      _
    $region43: #{tpu_custom_call.1} parent=1 // pred_check_branch
      %1254 = sbr.rel (0) target = $region45
    $region44: #{tpu_custom_call.1} parent=1 // pred_region
      %1255 = dma.done [#allocation4], 128
    $region45: #{tpu_custom_call.1} parent=1 // pred_fallthru
      _
    %1256 = vsyncpa [#allocation3], 1
    %1257 = vsyncpa [#allocation4], 1

</llo_original>
